<compile_context>
chip_gen: v5e
topology: v5e:2x2
jax: 0.10.0
libtpu: 0.0.40
codegen_flags: <defaults>
</compile_context>

<pallas_src>
import functools

import jax
import jax.numpy as jnp
from jax.experimental import pallas as pl
from jax.experimental.pallas import tpu as pltpu

BN_EPS = 1e-5
LANE = 128
SUBLANE = 16          # row-tile granularity (covers bf16 (16,128) packing)


def _round_up(x, m):
    return (x + m - 1) // m * m


def _vmem_capacity_bytes():
    try:
        return int(pltpu.get_tpu_info().vmem_capacity_bytes)
    except Exception:
        return 64 * 1024 * 1024        # v7x-safe default


def _choose_batch_tile(batch, k_total, hp, stream_itemsize, budget):
    """Largest multiple-of-16 row tile whose pass-1 working set (streams +
    resident weights + hidden-tile outputs, conservatively x2 buffered) fits
    `budget`; capped at 512 rows (>=85% of HBM roofline per measurements)."""
    resident = 2 * (k_total * hp * stream_itemsize + hp * 4)
    per_row = 2 * k_total * stream_itemsize + 2 * hp * 4
    avail = budget - resident - (2 << 20)
    if avail <= per_row * SUBLANE:
        tb = SUBLANE
    else:
        tb = (avail // per_row) // SUBLANE * SUBLANE
    return max(SUBLANE, min(tb, 512, _round_up(batch, SUBLANE)))


# ---------------------------------------------------------------------------
# Pass 1: fused sequence-mean + Linear1, hidden tiles + per-tile BN partials.
# ---------------------------------------------------------------------------
def _pass1_kernel(title_ref, content_ref, w1t_ref, w1c_ref, b1_ref,
                  h_ref, stat_ref, *, batch_tile, n_pad_rows):
    # Mean is folded into the pre-scaled, S-tiled weights -> pure MXU work.
    h_nb = jnp.dot(title_ref[...], w1t_ref[...],
                   preferred_element_type=jnp.float32)
    h_nb = h_nb + jnp.dot(content_ref[...], w1c_ref[...],
                          preferred_element_type=jnp.float32)
    h_ref[...] = h_nb + b1_ref[...]

    hp = h_nb.shape[1]
    # Rows 0/1 of the (8, Hp) stats block hold sum / sum-of-squares of the
    # bias-free activations for this tile; remaining rows are just padding to
    # keep the output block (8,128)-aligned.
    stat_ref[2:, :] = jnp.zeros((6, hp), jnp.float32)

    def write_stats(x):
        stat_ref[0:1, :] = jnp.sum(x, axis=0, keepdims=True)
        stat_ref[1:2, :] = jnp.sum(x * h_nb, axis=0, keepdims=True)

    if n_pad_rows == 0:
        # No padded batch rows anywhere: single unmasked path for every tile.
        write_stats(h_nb)
    else:
        # Only the last tile contains padded rows -> mask only there.
        j = pl.program_id(0)
        last = pl.num_programs(0) - 1

        @pl.when(j != last)
        def _():
            write_stats(h_nb)

        @pl.when(j == last)
        def _():
            row = jax.lax.broadcasted_iota(jnp.int32, (batch_tile, 1), 0)
            valid = (row < (batch_tile - n_pad_rows)).astype(jnp.float32)
            write_stats(h_nb * valid)


# ---------------------------------------------------------------------------
# Pass 2: per-tile BatchNorm affine + ReLU + Linear2 (pipelined stores).
# ---------------------------------------------------------------------------
def _pass2_kernel(h_ref, scale_ref, shift_ref, w2_ref, b2_ref, out_ref):
    a = jnp.maximum(h_ref[...] * scale_ref[...] + shift_ref[...], 0.0)
    out_ref[...] = (jnp.dot(a, w2_ref[...], preferred_element_type=jnp.float32)
                    + b2_ref[...])


def fasttext_forward(title, content, params, *, batch_tile=None,
                     stream_dtype=jnp.bfloat16, bn_eps=BN_EPS):
    """title: (B, S_t, E), content: (B, S_c, E) -> logits (B, num_classes)."""
    B, S_t, E = title.shape
    _, S_c, E2 = content.shape
    assert E2 == E
    H = params["w1"].shape[1]
    C = params["w2"].shape[1]
    Hp, Cp = _round_up(H, LANE), _round_up(C, LANE)
    f32 = jnp.float32
    sb = jnp.dtype(stream_dtype).itemsize

    vmem_cap = _vmem_capacity_bytes()
    budget = int(vmem_cap * 0.55)

    w1 = params["w1"].astype(f32)               # (2E, H)
    w1_t, w1_c = w1[:E], w1[E:]                 # split -> no concat in kernel

    fold_bytes = 2 * (S_t + S_c) * E * Hp * sb  # worst-case resident weights
    if fold_bytes <= budget // 2:
        # Fold the sequence mean into Linear1 (tile weights S times, /S).
        Kt, Kc = S_t * E, S_c * E
        t_in = title.reshape(B, Kt)
        c_in = content.reshape(B, Kc)
        w1t = jnp.tile(w1_t / S_t, (S_t, 1))    # (Kt, H)
        w1c = jnp.tile(w1_c / S_c, (S_c, 1))    # (Kc, H)
    else:
        # Guard: tiled weights would not fit VMEM for huge S*E*Hp.  Pre-reduce
        # the sequence means in one XLA pass; same kernels run with K = E.
        Kt = Kc = E
        t_in = title.mean(axis=1)
        c_in = content.mean(axis=1)
        w1t, w1c = w1_t, w1_c

    t_in = t_in.astype(stream_dtype)
    c_in = c_in.astype(stream_dtype)

    pad_h = ((0, 0), (0, Hp - H))
    w1t = jnp.pad(w1t, pad_h).astype(stream_dtype)
    w1c = jnp.pad(w1c, pad_h).astype(stream_dtype)
    b1 = jnp.pad(params["b1"].reshape(1, H).astype(f32), pad_h)
    gamma = jnp.pad(params["gamma"].astype(f32), (0, Hp - H))
    beta = jnp.pad(params["beta"].astype(f32), (0, Hp - H))
    w2 = jnp.pad(params["w2"].astype(f32), ((0, Hp - H), (0, Cp - C)))
    b2 = jnp.pad(params["b2"].reshape(1, C).astype(f32), ((0, 0), (0, Cp - C)))

    if batch_tile is None:
        batch_tile = _choose_batch_tile(B, Kt + Kc, Hp, sb, budget)
    TB = batch_tile
    assert TB % SUBLANE == 0, "batch tile must be a multiple of 16"
    B_pad = _round_up(B, TB)
    n_tiles = B_pad // TB
    n_pad_rows = B_pad - B

    if n_pad_rows:
        t_in = jnp.pad(t_in, ((0, n_pad_rows), (0, 0)))
        c_in = jnp.pad(c_in, ((0, n_pad_rows), (0, 0)))

    # Conservative (x2-buffered) VMEM accounting + headroom, capped at the
    # physical capacity, never below the 32 MiB scoped default.
    need1 = (2 * (Kt + Kc) * Hp * sb + 2 * Hp * 4
             + 2 * TB * (Kt + Kc) * sb + 2 * TB * Hp * 4 + 2 * 8 * Hp * 4)
    need2 = (2 * Hp * Cp * 4 + 2 * (2 * Hp + Cp) * 4
             + 2 * TB * Hp * 4 + 2 * TB * Cp * 4)

    def _limit(need):
        return int(min(vmem_cap, max(need + (4 << 20), 32 << 20)))

    def _const(shape, single_buffer):
        # Resident blocks (constant index_map): single-buffer them when the
        # installed Pallas supports pipeline_mode=pl.Buffered(1).
        idx = lambda j: (0,) * len(shape)
        if single_buffer and hasattr(pl, "Buffered"):
            return pl.BlockSpec(shape, idx, pipeline_mode=pl.Buffered(1))
        return pl.BlockSpec(shape, idx)

    def _run(single_buffer):
        pass1 = pl.pallas_call(
            functools.partial(_pass1_kernel, batch_tile=TB,
                              n_pad_rows=n_pad_rows),
            out_shape=(jax.ShapeDtypeStruct((B_pad, Hp), f32),
                       jax.ShapeDtypeStruct((8 * n_tiles, Hp), f32)),
            grid_spec=pltpu.PrefetchScalarGridSpec(
                num_scalar_prefetch=0,
                grid=(n_tiles,),
                in_specs=[
                    pl.BlockSpec((TB, Kt), lambda j: (j, 0)),   # title stream
                    pl.BlockSpec((TB, Kc), lambda j: (j, 0)),   # content stream
                    _const((Kt, Hp), single_buffer),            # folded w1 (title)
                    _const((Kc, Hp), single_buffer),            # folded w1 (content)
                    _const((1, Hp), single_buffer),             # b1
                ],
                out_specs=[
                    pl.BlockSpec((TB, Hp), lambda j: (j, 0)),   # hidden tiles
                    pl.BlockSpec((8, Hp), lambda j: (j, 0)),    # per-tile BN partials
                ]),
            compiler_params=pltpu.CompilerParams(
                dimension_semantics=("parallel",),
                vmem_limit_bytes=_limit(need1)),
            cost_estimate=pl.CostEstimate(
                flops=2 * B_pad * (Kt + Kc) * Hp,
                transcendentals=0,
                bytes_accessed=(B_pad * (Kt + Kc) * sb
                                + (Kt + Kc) * Hp * sb + B_pad * Hp * 4)),
        )
        h_out, stats = pass1(t_in, c_in, w1t, w1c, b1)

        # Tiny (n_tiles, Hp) BN-statistics finalize in plain XLA.  Stats are on
        # the bias-free activations (variance is shift-invariant), which avoids
        # the worst E[h^2]-mu^2 cancellation when b1 dominates the mean.
        stats = stats.reshape(n_tiles, 8, Hp)
        sum_nb = jnp.sum(stats[:, 0, :], axis=0)
        sq_nb = jnp.sum(stats[:, 1, :], axis=0)
        mean_nb = sum_nb / B
        var = jnp.maximum(sq_nb / B - mean_nb * mean_nb, 0.0)   # biased var
        scale_v = gamma * jax.lax.rsqrt(var + bn_eps)
        shift_v = beta - (mean_nb + b1[0]) * scale_v
        scale = scale_v.reshape(1, Hp)
        shift = shift_v.reshape(1, Hp)

        pass2 = pl.pallas_call(
            _pass2_kernel,
            out_shape=jax.ShapeDtypeStruct((B_pad, Cp), f32),
            grid_spec=pltpu.PrefetchScalarGridSpec(
                num_scalar_prefetch=0,
                grid=(n_tiles,),
                in_specs=[
                    pl.BlockSpec((TB, Hp), lambda j: (j, 0)),   # hidden tiles
                    _const((1, Hp), single_buffer),             # BN scale
                    _const((1, Hp), single_buffer),             # BN shift
                    _const((Hp, Cp), single_buffer),            # w2
                    _const((1, Cp), single_buffer),             # b2
                ],
                out_specs=pl.BlockSpec((TB, Cp), lambda j: (j, 0))),
            compiler_params=pltpu.CompilerParams(
                dimension_semantics=("parallel",),
                vmem_limit_bytes=_limit(need2)),
        )
        logits = pass2(h_out, scale, shift, w2, b2)
        return logits[:B, :C]

    try:
        return _run(True)
    except Exception:
        # pl.Buffered(1) single-buffering unsupported on this jax version:
        # retry with default double-buffered resident blocks.
        return _run(False)


def fasttext_reference(title, content, params, bn_eps=BN_EPS):
    """Pure-JAX reference matching the PyTorch module (train-mode BN)."""
    x = jnp.concatenate([title.mean(axis=1), content.mean(axis=1)], axis=1)
    h = x @ params["w1"] + params["b1"].reshape(1, -1)
    mu = h.mean(axis=0, keepdims=True)
    var = ((h - mu) ** 2).mean(axis=0, keepdims=True)
    h = (h - mu) * jax.lax.rsqrt(var + bn_eps)
    h = h * params["gamma"].reshape(1, -1) + params["beta"].reshape(1, -1)
    h = jnp.maximum(h, 0.0)
    return h @ params["w2"] + params["b2"].reshape(1, -1)


def init_params(key, embedding_dim, linear_hidden_size, num_classes):
    """Deterministic synthetic init (shapes from FastText.__init__)."""
    k1, k2, k3, k4 = jax.random.split(key, 4)
    in1 = embedding_dim * 2
    s1 = 1.0 / jnp.sqrt(in1)
    s2 = 1.0 / jnp.sqrt(linear_hidden_size)
    return {
        "w1": jax.random.uniform(k1, (in1, linear_hidden_size), jnp.float32, -s1, s1),
        "b1": jax.random.uniform(k2, (linear_hidden_size,), jnp.float32, -s1, s1),
        "gamma": jnp.ones((linear_hidden_size,), jnp.float32),
        "beta": jnp.zeros((linear_hidden_size,), jnp.float32),
        "w2": jax.random.uniform(k3, (linear_hidden_size, num_classes), jnp.float32, -s2, s2),
        "b2": jax.random.uniform(k4, (num_classes,), jnp.float32, -s2, s2),
    }


if __name__ == "__main__":
    # Small shapes consistent with the module's forward.
    B = 20                  # batch (not a tile multiple -> exercises masking)
    S_TITLE = 12            # title sequence length
    S_CONTENT = 20          # content sequence length
    E = 32                  # opt.embedding_dim
    H = 64                  # opt.linear_hidden_size
    NUM_CLASSES = 10        # opt.num_classes

    key = jax.random.PRNGKey(0)
    k_title, k_content, k_params = jax.random.split(key, 3)

    title = jax.random.normal(k_title, (B, S_TITLE, E), jnp.float32)
    content = jax.random.normal(k_content, (B, S_CONTENT, E), jnp.float32)
    params = init_params(k_params, E, H, NUM_CLASSES)

    ref = fasttext_reference(title, content, params)

    # f32 streams: tight numerical check (batch_tile=16 -> 2 tiles, padded last).
    out_f32 = fasttext_forward(title, content, params, batch_tile=16,
                               stream_dtype=jnp.float32)
    out_f32 = jax.block_until_ready(out_f32)
    assert out_f32.shape == (B, NUM_CLASSES), out_f32.shape
    err_f32 = float(jnp.max(jnp.abs(out_f32 - ref)))
    assert err_f32 < 2e-3, f"f32-stream mismatch vs reference: {err_f32}"

    # bf16 streams (default fast path): looser tolerance for input quantization.
    out_bf16 = fasttext_forward(title, content, params, batch_tile=16)
    out_bf16 = jax.block_until_ready(out_bf16)
    assert out_bf16.shape == (B, NUM_CLASSES), out_bf16.shape
    err_bf16 = float(jnp.max(jnp.abs(out_bf16 - ref)))
    assert err_bf16 < 7e-2, f"bf16-stream mismatch vs reference: {err_bf16}"

    print("KERNEL_OK")
</pallas_src>

<mosaic_0001>
module attributes {stable_mosaic.version = 11 : i64} {
  func.func @_pass1_kernel(%arg0: i32, %arg1: memref<16x384xf32, #tpu.memory_space<vmem>>, %arg2: memref<16x640xf32, #tpu.memory_space<vmem>>, %arg3: memref<384x128xf32, #tpu.memory_space<vmem>>, %arg4: memref<640x128xf32, #tpu.memory_space<vmem>>, %arg5: memref<1x128xf32, #tpu.memory_space<vmem>>, %arg6: memref<16x128xf32, #tpu.memory_space<vmem>>, %arg7: memref<8x128xf32, #tpu.memory_space<vmem>>) attributes {dimension_semantics = [#tpu.dimension_semantics<parallel>], iteration_bounds = array<i64: 2>, scalar_prefetch = 0 : i64, scratch_operands = 0 : i64, tpu.core_type = #tpu.core_type<tc>, window_params = [{transform_indices = @transform_0, window_bounds = array<i64: 16, 384>}, {transform_indices = @transform_1, window_bounds = array<i64: 16, 640>}, {pipeline_mode = #tpu.pipeline_mode<synchronous>, transform_indices = @transform_2, window_bounds = array<i64: 384, 128>}, {pipeline_mode = #tpu.pipeline_mode<synchronous>, transform_indices = @transform_3, window_bounds = array<i64: 640, 128>}, {pipeline_mode = #tpu.pipeline_mode<synchronous>, transform_indices = @transform_4, window_bounds = array<i64: 1, 128>}, {transform_indices = @transform_5, window_bounds = array<i64: 16, 128>}, {transform_indices = @transform_6, window_bounds = array<i64: 8, 128>}]} {
    %c0 = arith.constant 0 : index
    %c0_0 = arith.constant 0 : index
    %0 = vector.load %arg1[%c0, %c0_0] : memref<16x384xf32, #tpu.memory_space<vmem>>, vector<16x384xf32>
    %c0_1 = arith.constant 0 : index
    %c0_2 = arith.constant 0 : index
    %1 = vector.load %arg3[%c0_1, %c0_2] : memref<384x128xf32, #tpu.memory_space<vmem>>, vector<384x128xf32>
    %cst = arith.constant dense<0.000000e+00> : vector<16x128xf32>
    %2 = tpu.matmul %0, %1, %cst {dimension_numbers = #tpu.dot_dimension_numbers<[1], [0], [0], [1], [0, 0, 1, 1], [], []>} : vector<16x384xf32>, vector<384x128xf32>, vector<16x128xf32> -> vector<16x128xf32>
    %c0_3 = arith.constant 0 : index
    %c0_4 = arith.constant 0 : index
    %3 = vector.load %arg2[%c0_3, %c0_4] : memref<16x640xf32, #tpu.memory_space<vmem>>, vector<16x640xf32>
    %c0_5 = arith.constant 0 : index
    %c0_6 = arith.constant 0 : index
    %4 = vector.load %arg4[%c0_5, %c0_6] : memref<640x128xf32, #tpu.memory_space<vmem>>, vector<640x128xf32>
    %cst_7 = arith.constant dense<0.000000e+00> : vector<16x128xf32>
    %5 = tpu.matmul %3, %4, %cst_7 {dimension_numbers = #tpu.dot_dimension_numbers<[1], [0], [0], [1], [0, 0, 1, 1], [], []>} : vector<16x640xf32>, vector<640x128xf32>, vector<16x128xf32> -> vector<16x128xf32>
    %6 = arith.addf %2, %5 : vector<16x128xf32>
    %c0_8 = arith.constant 0 : index
    %c0_9 = arith.constant 0 : index
    %7 = vector.load %arg5[%c0_8, %c0_9] : memref<1x128xf32, #tpu.memory_space<vmem>>, vector<1x128xf32>
    %8 = vector.broadcast %7 : vector<1x128xf32> to vector<16x128xf32>
    %9 = arith.addf %6, %8 : vector<16x128xf32>
    %c0_10 = arith.constant 0 : index
    %c0_11 = arith.constant 0 : index
    %10 = vector.load %arg6[%c0_10, %c0_11] : memref<16x128xf32, #tpu.memory_space<vmem>>, vector<16x128xf32>
    tpu.vector_store %arg6[%c0_10, %c0_11], %9 {strides = array<i32>} : memref<16x128xf32, #tpu.memory_space<vmem>>, vector<16x128xf32>,
    %cst_12 = arith.constant 0.000000e+00 : f32
    %11 = vector.broadcast %cst_12 : f32 to vector<6x128xf32>
    %c2 = arith.constant 2 : index
    %c0_13 = arith.constant 0 : index
    %12 = vector.load %arg7[%c2, %c0_13] : memref<8x128xf32, #tpu.memory_space<vmem>>, vector<6x128xf32>
    tpu.vector_store %arg7[%c2, %c0_13], %11 {strides = array<i32>} : memref<8x128xf32, #tpu.memory_space<vmem>>, vector<6x128xf32>,
    %c1_i32 = arith.constant 1 : i32
    %13 = arith.cmpi ne, %arg0, %c1_i32 : i32
    %14 = arith.extui %13 : i1 to i32
    %c0_i32 = arith.constant 0 : i32
    %15 = arith.cmpi ne, %14, %c0_i32 : i32
    scf.if %15 {
      %cst_16 = arith.constant dense<0.000000e+00> : vector<128xf32>
      %19 = vector.multi_reduction <add>, %6, %cst_16 [0] : vector<16x128xf32> to vector<128xf32>
      %20 = vector.shape_cast %19 : vector<128xf32> to vector<1x128xf32>
      %c0_17 = arith.constant 0 : index
      %c0_18 = arith.constant 0 : index
      %21 = vector.load %arg7[%c0_17, %c0_18] : memref<8x128xf32, #tpu.memory_space<vmem>>, vector<1x128xf32>
      tpu.vector_store %arg7[%c0_17, %c0_18], %20 {strides = array<i32>} : memref<8x128xf32, #tpu.memory_space<vmem>>, vector<1x128xf32>,
      %22 = arith.mulf %6, %6 : vector<16x128xf32>
      %cst_19 = arith.constant dense<0.000000e+00> : vector<128xf32>
      %23 = vector.multi_reduction <add>, %22, %cst_19 [0] : vector<16x128xf32> to vector<128xf32>
      %24 = vector.shape_cast %23 : vector<128xf32> to vector<1x128xf32>
      %c1 = arith.constant 1 : index
      %c0_20 = arith.constant 0 : index
      %25 = vector.load %arg7[%c1, %c0_20] : memref<8x128xf32, #tpu.memory_space<vmem>>, vector<1x128xf32>
      tpu.vector_store %arg7[%c1, %c0_20], %24 {strides = array<i32>} : memref<8x128xf32, #tpu.memory_space<vmem>>, vector<1x128xf32>,
    } else {
    }
    %c1_i32_14 = arith.constant 1 : i32
    %16 = arith.cmpi eq, %arg0, %c1_i32_14 : i32
    %17 = arith.extui %16 : i1 to i32
    %c0_i32_15 = arith.constant 0 : i32
    %18 = arith.cmpi ne, %17, %c0_i32_15 : i32
    scf.if %18 {
      %19 = tpu.iota {dimensions = array<i32: 0>} : vector<16x1xi32>
      %c4_i32 = arith.constant 4 : i32
      %20 = vector.broadcast %c4_i32 : i32 to vector<16x1xi32>
      %21 = arith.cmpi slt, %19, %20 : vector<16x1xi32>
      %22 = arith.extui %21 : vector<16x1xi1> to vector<16x1xi32>
      %23 = arith.sitofp %22 : vector<16x1xi32> to vector<16x1xf32>
      %24 = vector.broadcast %23 : vector<16x1xf32> to vector<16x128xf32>
      %25 = arith.mulf %6, %24 : vector<16x128xf32>
      %cst_16 = arith.constant dense<0.000000e+00> : vector<128xf32>
      %26 = vector.multi_reduction <add>, %25, %cst_16 [0] : vector<16x128xf32> to vector<128xf32>
      %27 = vector.shape_cast %26 : vector<128xf32> to vector<1x128xf32>
      %c0_17 = arith.constant 0 : index
      %c0_18 = arith.constant 0 : index
      %28 = vector.load %arg7[%c0_17, %c0_18] : memref<8x128xf32, #tpu.memory_space<vmem>>, vector<1x128xf32>
      tpu.vector_store %arg7[%c0_17, %c0_18], %27 {strides = array<i32>} : memref<8x128xf32, #tpu.memory_space<vmem>>, vector<1x128xf32>,
      %29 = arith.mulf %25, %6 : vector<16x128xf32>
      %cst_19 = arith.constant dense<0.000000e+00> : vector<128xf32>
      %30 = vector.multi_reduction <add>, %29, %cst_19 [0] : vector<16x128xf32> to vector<128xf32>
      %31 = vector.shape_cast %30 : vector<128xf32> to vector<1x128xf32>
      %c1 = arith.constant 1 : index
      %c0_20 = arith.constant 0 : index
      %32 = vector.load %arg7[%c1, %c0_20] : memref<8x128xf32, #tpu.memory_space<vmem>>, vector<1x128xf32>
      tpu.vector_store %arg7[%c1, %c0_20], %31 {strides = array<i32>} : memref<8x128xf32, #tpu.memory_space<vmem>>, vector<1x128xf32>,
    } else {
    }
    return
  }
  func.func @transform_0(%arg0: i32) -> (i32, i32) {
    %c0_i32 = arith.constant 0 : i32
    %c0_i32_0 = arith.constant 0 : i32
    return %arg0, %c0_i32 : i32, i32
  }
  func.func @transform_1(%arg0: i32) -> (i32, i32) {
    %c0_i32 = arith.constant 0 : i32
    %c0_i32_0 = arith.constant 0 : i32
    return %arg0, %c0_i32 : i32, i32
  }
  func.func @transform_2(%arg0: i32) -> (i32, i32) {
    %c0_i32 = arith.constant 0 : i32
    %c0_i32_0 = arith.constant 0 : i32
    %c0_i32_1 = arith.constant 0 : i32
    return %c0_i32, %c0_i32_0 : i32, i32
  }
  func.func @transform_3(%arg0: i32) -> (i32, i32) {
    %c0_i32 = arith.constant 0 : i32
    %c0_i32_0 = arith.constant 0 : i32
    %c0_i32_1 = arith.constant 0 : i32
    return %c0_i32, %c0_i32_0 : i32, i32
  }
  func.func @transform_4(%arg0: i32) -> (i32, i32) {
    %c0_i32 = arith.constant 0 : i32
    %c0_i32_0 = arith.constant 0 : i32
    %c0_i32_1 = arith.constant 0 : i32
    return %c0_i32, %c0_i32_0 : i32, i32
  }
  func.func @transform_5(%arg0: i32) -> (i32, i32) {
    %c0_i32 = arith.constant 0 : i32
    %c0_i32_0 = arith.constant 0 : i32
    return %arg0, %c0_i32 : i32, i32
  }
  func.func @transform_6(%arg0: i32) -> (i32, i32) {
    %c0_i32 = arith.constant 0 : i32
    %c0_i32_0 = arith.constant 0 : i32
    return %arg0, %c0_i32 : i32, i32
  }
}

module attributes {stable_mosaic.version = 11 : i64} {
  func.func @_pass1_kernel(%arg0: i32, %arg1: memref<16x384xf32, #tpu.memory_space<vmem>>, %arg2: memref<16x640xf32, #tpu.memory_space<vmem>>, %arg3: memref<384x128xf32, #tpu.memory_space<vmem>>, %arg4: memref<640x128xf32, #tpu.memory_space<vmem>>, %arg5: memref<1x128xf32, #tpu.memory_space<vmem>>, %arg6: memref<16x128xf32, #tpu.memory_space<vmem>>, %arg7: memref<8x128xf32, #tpu.memory_space<vmem>>) attributes {dimension_semantics = [#tpu.dimension_semantics<parallel>], iteration_bounds = array<i64: 2>, scalar_prefetch = 0 : i64, scratch_operands = 0 : i64, tpu.core_type = #tpu.core_type<tc>, window_params = [{transform_indices = @transform_0, window_bounds = array<i64: 16, 384>}, {transform_indices = @transform_1, window_bounds = array<i64: 16, 640>}, {pipeline_mode = #tpu.pipeline_mode<synchronous>, transform_indices = @transform_2, window_bounds = array<i64: 384, 128>}, {pipeline_mode = #tpu.pipeline_mode<synchronous>, transform_indices = @transform_3, window_bounds = array<i64: 640, 128>}, {pipeline_mode = #tpu.pipeline_mode<synchronous>, transform_indices = @transform_4, window_bounds = array<i64: 1, 128>}, {transform_indices = @transform_5, window_bounds = array<i64: 16, 128>}, {transform_indices = @transform_6, window_bounds = array<i64: 8, 128>}]} {
    %c0 = arith.constant 0 : index
    %c0_0 = arith.constant 0 : index
    %0 = vector.load %arg1[%c0, %c0_0] : memref<16x384xf32, #tpu.memory_space<vmem>>, vector<16x384xf32>
    %c0_1 = arith.constant 0 : index
    %c0_2 = arith.constant 0 : index
    %1 = vector.load %arg3[%c0_1, %c0_2] : memref<384x128xf32, #tpu.memory_space<vmem>>, vector<384x128xf32>
    %cst = arith.constant dense<0.000000e+00> : vector<16x128xf32>
    %2 = tpu.matmul %0, %1, %cst {dimension_numbers = #tpu.dot_dimension_numbers<[1], [0], [0], [1], [0, 0, 1, 1], [], []>} : vector<16x384xf32>, vector<384x128xf32>, vector<16x128xf32> -> vector<16x128xf32>
    %c0_3 = arith.constant 0 : index
    %c0_4 = arith.constant 0 : index
    %3 = vector.load %arg2[%c0_3, %c0_4] : memref<16x640xf32, #tpu.memory_space<vmem>>, vector<16x640xf32>
    %c0_5 = arith.constant 0 : index
    %c0_6 = arith.constant 0 : index
    %4 = vector.load %arg4[%c0_5, %c0_6] : memref<640x128xf32, #tpu.memory_space<vmem>>, vector<640x128xf32>
    %cst_7 = arith.constant dense<0.000000e+00> : vector<16x128xf32>
    %5 = tpu.matmul %3, %4, %cst_7 {dimension_numbers = #tpu.dot_dimension_numbers<[1], [0], [0], [1], [0, 0, 1, 1], [], []>} : vector<16x640xf32>, vector<640x128xf32>, vector<16x128xf32> -> vector<16x128xf32>
    %6 = arith.addf %2, %5 : vector<16x128xf32>
    %c0_8 = arith.constant 0 : index
    %c0_9 = arith.constant 0 : index
    %7 = vector.load %arg5[%c0_8, %c0_9] : memref<1x128xf32, #tpu.memory_space<vmem>>, vector<1x128xf32>
    %8 = vector.broadcast %7 : vector<1x128xf32> to vector<16x128xf32>
    %9 = arith.addf %6, %8 : vector<16x128xf32>
    %c0_10 = arith.constant 0 : index
    %c0_11 = arith.constant 0 : index
    %10 = vector.load %arg6[%c0_10, %c0_11] : memref<16x128xf32, #tpu.memory_space<vmem>>, vector<16x128xf32>
    tpu.vector_store %arg6[%c0_10, %c0_11], %9 {strides = array<i32>} : memref<16x128xf32, #tpu.memory_space<vmem>>, vector<16x128xf32>,
    %cst_12 = arith.constant 0.000000e+00 : f32
    %11 = vector.broadcast %cst_12 : f32 to vector<6x128xf32>
    %c2 = arith.constant 2 : index
    %c0_13 = arith.constant 0 : index
    %12 = vector.load %arg7[%c2, %c0_13] : memref<8x128xf32, #tpu.memory_space<vmem>>, vector<6x128xf32>
    tpu.vector_store %arg7[%c2, %c0_13], %11 {strides = array<i32>} : memref<8x128xf32, #tpu.memory_space<vmem>>, vector<6x128xf32>,
    %c1_i32 = arith.constant 1 : i32
    %13 = arith.cmpi ne, %arg0, %c1_i32 : i32
    %14 = arith.extui %13 : i1 to i32
    %c0_i32 = arith.constant 0 : i32
    %15 = arith.cmpi ne, %14, %c0_i32 : i32
    scf.if %15 {
      %cst_16 = arith.constant dense<0.000000e+00> : vector<128xf32>
      %19 = vector.multi_reduction <add>, %6, %cst_16 [0] : vector<16x128xf32> to vector<128xf32>
      %20 = vector.shape_cast %19 : vector<128xf32> to vector<1x128xf32>
      %c0_17 = arith.constant 0 : index
      %c0_18 = arith.constant 0 : index
      %21 = vector.load %arg7[%c0_17, %c0_18] : memref<8x128xf32, #tpu.memory_space<vmem>>, vector<1x128xf32>
      tpu.vector_store %arg7[%c0_17, %c0_18], %20 {strides = array<i32>} : memref<8x128xf32, #tpu.memory_space<vmem>>, vector<1x128xf32>,
      %22 = arith.mulf %6, %6 : vector<16x128xf32>
      %cst_19 = arith.constant dense<0.000000e+00> : vector<128xf32>
      %23 = vector.multi_reduction <add>, %22, %cst_19 [0] : vector<16x128xf32> to vector<128xf32>
      %24 = vector.shape_cast %23 : vector<128xf32> to vector<1x128xf32>
      %c1 = arith.constant 1 : index
      %c0_20 = arith.constant 0 : index
      %25 = vector.load %arg7[%c1, %c0_20] : memref<8x128xf32, #tpu.memory_space<vmem>>, vector<1x128xf32>
      tpu.vector_store %arg7[%c1, %c0_20], %24 {strides = array<i32>} : memref<8x128xf32, #tpu.memory_space<vmem>>, vector<1x128xf32>,
    } else {
    }
    %c1_i32_14 = arith.constant 1 : i32
    %16 = arith.cmpi eq, %arg0, %c1_i32_14 : i32
    %17 = arith.extui %16 : i1 to i32
    %c0_i32_15 = arith.constant 0 : i32
    %18 = arith.cmpi ne, %17, %c0_i32_15 : i32
    scf.if %18 {
      %19 = tpu.iota {dimensions = array<i32: 0>} : vector<16x1xi32>
      %c4_i32 = arith.constant 4 : i32
      %20 = vector.broadcast %c4_i32 : i32 to vector<16x1xi32>
      %21 = arith.cmpi slt, %19, %20 : vector<16x1xi32>
      %22 = arith.extui %21 : vector<16x1xi1> to vector<16x1xi32>
      %23 = arith.sitofp %22 : vector<16x1xi32> to vector<16x1xf32>
      %24 = vector.broadcast %23 : vector<16x1xf32> to vector<16x128xf32>
      %25 = arith.mulf %6, %24 : vector<16x128xf32>
      %cst_16 = arith.constant dense<0.000000e+00> : vector<128xf32>
      %26 = vector.multi_reduction <add>, %25, %cst_16 [0] : vector<16x128xf32> to vector<128xf32>
      %27 = vector.shape_cast %26 : vector<128xf32> to vector<1x128xf32>
      %c0_17 = arith.constant 0 : index
      %c0_18 = arith.constant 0 : index
      %28 = vector.load %arg7[%c0_17, %c0_18] : memref<8x128xf32, #tpu.memory_space<vmem>>, vector<1x128xf32>
      tpu.vector_store %arg7[%c0_17, %c0_18], %27 {strides = array<i32>} : memref<8x128xf32, #tpu.memory_space<vmem>>, vector<1x128xf32>,
      %29 = arith.mulf %25, %6 : vector<16x128xf32>
      %cst_19 = arith.constant dense<0.000000e+00> : vector<128xf32>
      %30 = vector.multi_reduction <add>, %29, %cst_19 [0] : vector<16x128xf32> to vector<128xf32>
      %31 = vector.shape_cast %30 : vector<128xf32> to vector<1x128xf32>
      %c1 = arith.constant 1 : index
      %c0_20 = arith.constant 0 : index
      %32 = vector.load %arg7[%c1, %c0_20] : memref<8x128xf32, #tpu.memory_space<vmem>>, vector<1x128xf32>
      tpu.vector_store %arg7[%c1, %c0_20], %31 {strides = array<i32>} : memref<8x128xf32, #tpu.memory_space<vmem>>, vector<1x128xf32>,
    } else {
    }
    return
  }
  func.func @transform_0(%arg0: i32) -> (i32, i32) {
    %c0_i32 = arith.constant 0 : i32
    %c0_i32_0 = arith.constant 0 : i32
    return %arg0, %c0_i32 : i32, i32
  }
  func.func @transform_1(%arg0: i32) -> (i32, i32) {
    %c0_i32 = arith.constant 0 : i32
    %c0_i32_0 = arith.constant 0 : i32
    return %arg0, %c0_i32 : i32, i32
  }
  func.func @transform_2(%arg0: i32) -> (i32, i32) {
    %c0_i32 = arith.constant 0 : i32
    %c0_i32_0 = arith.constant 0 : i32
    %c0_i32_1 = arith.constant 0 : i32
    return %c0_i32, %c0_i32_0 : i32, i32
  }
  func.func @transform_3(%arg0: i32) -> (i32, i32) {
    %c0_i32 = arith.constant 0 : i32
    %c0_i32_0 = arith.constant 0 : i32
    %c0_i32_1 = arith.constant 0 : i32
    return %c0_i32, %c0_i32_0 : i32, i32
  }
  func.func @transform_4(%arg0: i32) -> (i32, i32) {
    %c0_i32 = arith.constant 0 : i32
    %c0_i32_0 = arith.constant 0 : i32
    %c0_i32_1 = arith.constant 0 : i32
    return %c0_i32, %c0_i32_0 : i32, i32
  }
  func.func @transform_5(%arg0: i32) -> (i32, i32) {
    %c0_i32 = arith.constant 0 : i32
    %c0_i32_0 = arith.constant 0 : i32
    return %arg0, %c0_i32 : i32, i32
  }
  func.func @transform_6(%arg0: i32) -> (i32, i32) {
    %c0_i32 = arith.constant 0 : i32
    %c0_i32_0 = arith.constant 0 : i32
    return %arg0, %c0_i32 : i32, i32
  }
}

</mosaic_0001>

<llo_original>
// kernel: tpu_custom_call.1
$region0: #{tpu_custom_call.1}
  #allocation0 [shape = 'u32[]', space=smem, size = 0x4, offset = 0x4, fixed_abs, tag = 'smem constant byte address 0x4 - core index']
  #allocation1 [shape = 'u32[72,128]{1,0:T(1,128)}', space=vmem, size = 0x9000, scoped, tag = 'internal scratch']
  %s0 = inlined_call_operand.hbm [shape: f32[32,384], index: 0, kind: input, shape index: {}]
  %s1 = inlined_call_operand.hbm [shape: f32[32,640], index: 1, kind: input, shape index: {}]
  %s2 = inlined_call_operand.hbm [shape: f32[384,128], index: 2, kind: input, shape index: {}]
  %s3 = inlined_call_operand.hbm [shape: f32[640,128], index: 3, kind: input, shape index: {}]
  %s4 = inlined_call_operand.vmem [shape: f32[1,128], index: 4, kind: input, shape index: {}]
  %s5 = inlined_call_operand.hbm [shape: f32[32,128], index: 5, kind: output, shape index: {0}]
  %s6 = inlined_call_operand.hbm [shape: f32[16,128], index: 6, kind: output, shape index: {1}]
  %7 = xla_tuple %s5, %s6
  %s8 = sld [smem:[#allocation0]]
  $region85: #{tpu_custom_call.1} parent=0
    _
  %s10 = ssub.s32 1, %s8
  %s11 = scalar_select 0, %s10, %s8
  $region1: #{tpu_custom_call.1} parent=0
    #allocation2 [shape = 'u8[49152]{0}', space=vmem, size = 0xc000, scoped, tag = 'input window, operand 0']
    #allocation3 [shape = 's32[2]{0}', space=sflag, size = 0x8, scoped, tag = 'scoped memory for tpu_custom_call.1']
    #allocation4 [shape = 's32[2]{0}', space=sflag, size = 0x8, scoped, tag = 'scoped memory for tpu_custom_call.1']
    #allocation5 [shape = 'u8[81920]{0}', space=vmem, size = 0x14000, scoped, tag = 'input window, operand 1']
    #allocation6 [shape = 's32[2]{0}', space=sflag, size = 0x8, scoped, tag = 'scoped memory for tpu_custom_call.1']
    #allocation7 [shape = 'u8[196608]{0}', space=vmem, size = 0x30000, scoped, tag = 'input window, operand 2, single buffered']
    #allocation8 [shape = 'u8[327680]{0}', space=vmem, size = 0x50000, scoped, tag = 'input window, operand 3, single buffered']
    #allocation9 [shape = 's32[1]{0}', space=sflag, size = 0x4, scoped, tag = 'scoped memory for tpu_custom_call.1']
    #allocation10 [shape = 'u8[16384]{0}', space=vmem, size = 0x4000, scoped, tag = 'output window, operand 0']
    #allocation11 [shape = 'u8[8192]{0}', space=vmem, size = 0x2000, scoped, tag = 'output window, operand 1']
    #allocation12 [shape = 's32[2]{0}', space=sflag, size = 0x8, scoped, tag = 'scoped memory for tpu_custom_call.1']
    %12 = vsyncpa [#allocation3], 0
    %s13 = scalar_lea.sflag [#allocation3], 1
    %14 = vsyncpa %s13, 0
    %15 = vsyncpa [#allocation6], 0
    %s16 = scalar_lea.sflag [#allocation6], 1
    %17 = vsyncpa %s16, 0
    %18 = vsyncpa [#allocation9], 0
    %19 = vsyncpa [#allocation4], 0
    %s20 = scalar_lea.sflag [#allocation4], 1
    %21 = vsyncpa %s20, 0
    %22 = vsyncpa [#allocation12], 0
    %s23 = scalar_lea.sflag [#allocation12], 1
    %24 = vsyncpa %s23, 0
    loop: start=0, step=1, limit=4
    $region2: #{tpu_custom_call.1} parent=1 // loop_pre_header
      _
    $region3: #{tpu_custom_call.1} parent=1 // loop_header
      %s26 = sphi 0, %s30
      %p27 = scmp.ge.s32.totalorder %s26, 4
      %s36 = sphi 0, %s38
      %s39 = sphi 0, %s36
      %s40 = sphi 0, %s39
      %s56 = sphi 0, %s40
      %s62 = sphi 0, %s64
      %s65 = sphi 0, %s62
      %s66 = sphi 0, %s65
      %s82 = sphi 0, %s66
      %s86 = sphi 0, %s86
      %s88 = sphi 0, %s86
      %s89 = sphi 0, %s88
      %s103 = sphi 0, %s89
      %s107 = sphi 0, %s107
      %s109 = sphi 0, %s107
      %s110 = sphi 0, %s109
      %s124 = sphi 0, %s110
      %s128 = sphi 0, %s128
      %s130 = sphi 0, %s128
      %s131 = sphi 0, %s130
      %s145 = sphi 0, %s131
      %s151 = sphi 0, %s153
      %s154 = sphi 0, %s151
      %s155 = sphi 0, %s154
      %s171 = sphi 0, %s155
      %s177 = sphi 0, %s179
      %s180 = sphi 0, %s177
      %s181 = sphi 0, %s180
      %s197 = sphi 0, %s181
    $region4: #{tpu_custom_call.1} parent=1 // loop_header_branch
      %29 = sbr.rel (%p27) target = $region8
    $region5: #{tpu_custom_call.1} parent=1 // loop_body
      %s31 = ssub.s32 %s26, 1
      %s32 = ssub.s32 %s26, 2
      %s33 = sadd.s32 %s26, 1
      %s34 = ssub.s32 %s26, %s33
      %p35 = scmp.eq.s32.totalorder %s34, 0
      %s37 = sadd.s32 %s36, 1
      %s38 = scalar_select %p35, %s36, %s37
      %p41 = pneg %p35
      %p42 = scmp.eq.s32.totalorder %s26, 1
      %p43 = por %p41, %p42
      %p44 = scmp.ne.s32.totalorder %s36, %s39
      %p45 = scmp.eq.s32.totalorder %s26, 0
      %p46 = por %p44, %p45
      %p47 = scmp.ne.s32.totalorder %s36, %s39
      %p48 = scmp.eq.s32.totalorder %s31, 1
      %p49 = por %p47, %p48
      %p50 = scmp.ne.s32.totalorder %s39, %s40
      %p51 = scmp.eq.s32.totalorder %s31, 0
      %p52 = por %p50, %p51
      %p53 = scmp.ne.s32.totalorder %s39, %s40
      %p54 = scmp.eq.s32.totalorder %s32, 1
      %p55 = por %p53, %p54
      %p57 = scmp.ne.s32.totalorder %s40, %s56
      %p58 = scmp.eq.s32.totalorder %s32, 0
      %p59 = por %p57, %p58
      %s60 = ssub.s32 %s26, %s33
      %p61 = scmp.eq.s32.totalorder %s60, 0
      %s63 = sadd.s32 %s62, 1
      %s64 = scalar_select %p61, %s62, %s63
      %p67 = pneg %p61
      %p68 = scmp.eq.s32.totalorder %s26, 1
      %p69 = por %p67, %p68
      %p70 = scmp.ne.s32.totalorder %s62, %s65
      %p71 = scmp.eq.s32.totalorder %s26, 0
      %p72 = por %p70, %p71
      %p73 = scmp.ne.s32.totalorder %s62, %s65
      %p74 = scmp.eq.s32.totalorder %s31, 1
      %p75 = por %p73, %p74
      %p76 = scmp.ne.s32.totalorder %s65, %s66
      %p77 = scmp.eq.s32.totalorder %s31, 0
      %p78 = por %p76, %p77
      %p79 = scmp.ne.s32.totalorder %s65, %s66
      %p80 = scmp.eq.s32.totalorder %s32, 1
      %p81 = por %p79, %p80
      %p83 = scmp.ne.s32.totalorder %s66, %s82
      %p84 = scmp.eq.s32.totalorder %s32, 0
      %p85 = por %p83, %p84
      %s87 = sadd.s32 %s86, 1
      %p90 = scmp.eq.s32.totalorder %s26, 1
      %p91 = scmp.ne.s32.totalorder %s86, %s88
      %p92 = scmp.eq.s32.totalorder %s26, 0
      %p93 = por %p91, %p92
      %p94 = scmp.ne.s32.totalorder %s86, %s88
      %p95 = scmp.eq.s32.totalorder %s31, 1
      %p96 = por %p94, %p95
      %p97 = scmp.ne.s32.totalorder %s88, %s89
      %p98 = scmp.eq.s32.totalorder %s31, 0
      %p99 = por %p97, %p98
      %p100 = scmp.ne.s32.totalorder %s88, %s89
      %p101 = scmp.eq.s32.totalorder %s32, 1
      %p102 = por %p100, %p101
      %p104 = scmp.ne.s32.totalorder %s89, %s103
      %p105 = scmp.eq.s32.totalorder %s32, 0
      %p106 = por %p104, %p105
      %s108 = sadd.s32 %s107, 1
      %p111 = scmp.eq.s32.totalorder %s26, 1
      %p112 = scmp.ne.s32.totalorder %s107, %s109
      %p113 = scmp.eq.s32.totalorder %s26, 0
      %p114 = por %p112, %p113
      %p115 = scmp.ne.s32.totalorder %s107, %s109
      %p116 = scmp.eq.s32.totalorder %s31, 1
      %p117 = por %p115, %p116
      %p118 = scmp.ne.s32.totalorder %s109, %s110
      %p119 = scmp.eq.s32.totalorder %s31, 0
      %p120 = por %p118, %p119
      %p121 = scmp.ne.s32.totalorder %s109, %s110
      %p122 = scmp.eq.s32.totalorder %s32, 1
      %p123 = por %p121, %p122
      %p125 = scmp.ne.s32.totalorder %s110, %s124
      %p126 = scmp.eq.s32.totalorder %s32, 0
      %p127 = por %p125, %p126
      %s129 = sadd.s32 %s128, 1
      %p132 = scmp.eq.s32.totalorder %s26, 1
      %p133 = scmp.ne.s32.totalorder %s128, %s130
      %p134 = scmp.eq.s32.totalorder %s26, 0
      %p135 = por %p133, %p134
      %p136 = scmp.ne.s32.totalorder %s128, %s130
      %p137 = scmp.eq.s32.totalorder %s31, 1
      %p138 = por %p136, %p137
      %p139 = scmp.ne.s32.totalorder %s130, %s131
      %p140 = scmp.eq.s32.totalorder %s31, 0
      %p141 = por %p139, %p140
      %p142 = scmp.ne.s32.totalorder %s130, %s131
      %p143 = scmp.eq.s32.totalorder %s32, 1
      %p144 = por %p142, %p143
      %p146 = scmp.ne.s32.totalorder %s131, %s145
      %p147 = scmp.eq.s32.totalorder %s32, 0
      %p148 = por %p146, %p147
      %s149 = ssub.s32 %s26, %s33
      %p150 = scmp.eq.s32.totalorder %s149, 0
      %s152 = sadd.s32 %s151, 1
      %s153 = scalar_select %p150, %s151, %s152
      %p156 = pneg %p150
      %p157 = scmp.eq.s32.totalorder %s26, 1
      %p158 = por %p156, %p157
      %p159 = scmp.ne.s32.totalorder %s151, %s154
      %p160 = scmp.eq.s32.totalorder %s26, 0
      %p161 = por %p159, %p160
      %p162 = scmp.ne.s32.totalorder %s151, %s154
      %p163 = scmp.eq.s32.totalorder %s31, 1
      %p164 = por %p162, %p163
      %p165 = scmp.ne.s32.totalorder %s154, %s155
      %p166 = scmp.eq.s32.totalorder %s31, 0
      %p167 = por %p165, %p166
      %p168 = scmp.ne.s32.totalorder %s154, %s155
      %p169 = scmp.eq.s32.totalorder %s32, 1
      %p170 = por %p168, %p169
      %p172 = scmp.ne.s32.totalorder %s155, %s171
      %p173 = scmp.eq.s32.totalorder %s32, 0
      %p174 = por %p172, %p173
      %s175 = ssub.s32 %s26, %s33
      %p176 = scmp.eq.s32.totalorder %s175, 0
      %s178 = sadd.s32 %s177, 1
      %s179 = scalar_select %p176, %s177, %s178
      %p182 = pneg %p176
      %p183 = scmp.eq.s32.totalorder %s26, 1
      %p184 = por %p182, %p183
      %p185 = scmp.ne.s32.totalorder %s177, %s180
      %p186 = scmp.eq.s32.totalorder %s26, 0
      %p187 = por %p185, %p186
      %p188 = scmp.ne.s32.totalorder %s177, %s180
      %p189 = scmp.eq.s32.totalorder %s31, 1
      %p190 = por %p188, %p189
      %p191 = scmp.ne.s32.totalorder %s180, %s181
      %p192 = scmp.eq.s32.totalorder %s31, 0
      %p193 = por %p191, %p192
      %p194 = scmp.ne.s32.totalorder %s180, %s181
      %p195 = scmp.eq.s32.totalorder %s32, 1
      %p196 = por %p194, %p195
      %p198 = scmp.ne.s32.totalorder %s181, %s197
      %p199 = scmp.eq.s32.totalorder %s32, 0
      %p200 = por %p198, %p199
      %p201 = scmp.le.s32.totalorder 1, %s26
      %p202 = scmp.lt.s32.totalorder %s26, 3
      %p203 = pnand %p201, %p202
      %p204 = pneg %p203
      // Predicated region
      $region9: #{tpu_custom_call.1} parent=5 // pred_check
        _
      $region10: #{tpu_custom_call.1} parent=5 // pred_check_branch
        %206 = sbr.rel (%p203) target = $region12
      $region11: #{tpu_custom_call.1} parent=5 // pred_region
        %s207 = ssub.s32 %s26, 1
        // Predicated region
        $region13: #{tpu_custom_call.1} parent=11 // pred_check
          %p208 = pneg %p99
        $region14: #{tpu_custom_call.1} parent=11 // pred_check_branch
          %210 = sbr.rel (%p208) target = $region16
        $region15: #{tpu_custom_call.1} parent=11 // pred_region
          %212 = vsyncadd [#allocation6], 0
          %s213 = sshll.u32 %s2, 4
          %s214 = int_to_ptr.hbm [resolvable:$true] %s213
          %s215 = sshll.u32 [#allocation7], 4
          %s216 = int_to_ptr.vmem [resolvable:$true] %s215
          %221 = dma.hbm_to_vmem [thread:$0]  %s214, 6144, %s216, [#allocation6], 128, 128, 8
        $region16: #{tpu_custom_call.1} parent=11 // pred_fallthru
          _
        // Predicated region
        $region17: #{tpu_custom_call.1} parent=11 // pred_check
          %p222 = pneg %p120
        $region18: #{tpu_custom_call.1} parent=11 // pred_check_branch
          %224 = sbr.rel (%p222) target = $region20
        $region19: #{tpu_custom_call.1} parent=11 // pred_region
          %226 = vsyncadd [#allocation9], 0
          %s227 = sshll.u32 %s3, 4
          %s228 = int_to_ptr.hbm [resolvable:$true] %s227
          %s229 = sshll.u32 [#allocation8], 4
          %s230 = int_to_ptr.vmem [resolvable:$true] %s229
          %235 = dma.hbm_to_vmem [thread:$0]  %s228, 10240, %s230, [#allocation9], 128, 128, 8
        $region20: #{tpu_custom_call.1} parent=11 // pred_fallthru
          _
        // Predicated region
        $region21: #{tpu_custom_call.1} parent=11 // pred_check
          %p236 = pneg %p141
        $region22: #{tpu_custom_call.1} parent=11 // pred_check_branch
          %238 = sbr.rel (%p236) target = $region24
        $region23: #{tpu_custom_call.1} parent=11 // pred_region
          _
        $region24: #{tpu_custom_call.1} parent=11 // pred_fallthru
          _
      $region12: #{tpu_custom_call.1} parent=5 // pred_fallthru
        _
      %p239 = scmp.lt.s32.totalorder %s26, 2
      // Predicated region
      $region25: #{tpu_custom_call.1} parent=5 // pred_check
        %p240 = pneg %p239
      $region26: #{tpu_custom_call.1} parent=5 // pred_check_branch
        %242 = sbr.rel (%p240) target = $region28
      $region27: #{tpu_custom_call.1} parent=5 // pred_region
        // Predicated region
        $region29: #{tpu_custom_call.1} parent=27 // pred_check
          %p243 = pneg %p46
        $region30: #{tpu_custom_call.1} parent=27 // pred_check_branch
          %245 = sbr.rel (%p243) target = $region32
        $region31: #{tpu_custom_call.1} parent=27 // pred_region
          %s246 = sand.u32 %s36, 1
          %s247 = scalar_lea.sflag [#allocation3], %s246
          %s248 = sand.u32 %s36, 1
          %s249 = smul.addr %s248, 48
          %s250 = scalar_lea.vmem [#allocation2], %s249
          %s251 = smul.u32 2, %s26
          %253 = vsyncadd %s247, 0
          %s254 = smul.addr %s251, 3
          %s255 = smul.addr %s254, 8
          %s256 = scalar_lea.hbm %s0, %s255
          %s257 = sshll.u32 %s256, 4
          %s258 = int_to_ptr.hbm [resolvable:$true] %s257
          %s259 = sshll.u32 %s250, 4
          %s260 = int_to_ptr.vmem [resolvable:$true] %s259
          %265 = dma.hbm_to_vmem [thread:$0]  %s258, 768, %s260, %s247, 384, 384, 24
        $region32: #{tpu_custom_call.1} parent=27 // pred_fallthru
          _
        // Predicated region
        $region33: #{tpu_custom_call.1} parent=27 // pred_check
          %p266 = pneg %p72
        $region34: #{tpu_custom_call.1} parent=27 // pred_check_branch
          %268 = sbr.rel (%p266) target = $region36
        $region35: #{tpu_custom_call.1} parent=27 // pred_region
          %s269 = sand.u32 %s26, 1
          %s270 = scalar_lea.sflag [#allocation6], %s269
          %s271 = sand.u32 %s62, 1
          %s272 = smul.addr %s271, 80
          %s273 = scalar_lea.vmem [#allocation5], %s272
          %s274 = smul.u32 2, %s26
          %276 = vsyncadd %s270, 0
          %s277 = smul.addr %s274, 5
          %s278 = smul.addr %s277, 8
          %s279 = scalar_lea.hbm %s1, %s278
          %s280 = sshll.u32 %s279, 4
          %s281 = int_to_ptr.hbm [resolvable:$true] %s280
          %s282 = sshll.u32 %s273, 4
          %s283 = int_to_ptr.vmem [resolvable:$true] %s282
          %288 = dma.hbm_to_vmem [thread:$0]  %s281, 1280, %s283, %s270, 640, 640, 40
        $region36: #{tpu_custom_call.1} parent=27 // pred_fallthru
          _
      $region28: #{tpu_custom_call.1} parent=5 // pred_fallthru
        _
      %p289 = scmp.le.s32.totalorder 1, %s26
      %p290 = scmp.lt.s32.totalorder %s26, 3
      %p291 = pnand %p289, %p290
      %p292 = pneg %p291
      // Predicated region
      $region37: #{tpu_custom_call.1} parent=5 // pred_check
        _
      $region38: #{tpu_custom_call.1} parent=5 // pred_check_branch
        %294 = sbr.rel (%p291) target = $region40
      $region39: #{tpu_custom_call.1} parent=5 // pred_region
        %s295 = ssub.s32 %s26, 1
        %s296 = sand.u32 %s39, 1
        %s297 = scalar_lea.sflag [#allocation3], %s296
        %s298 = sand.u32 %s39, 1
        %s299 = smul.addr %s298, 48
        %s300 = scalar_lea.vmem [#allocation2], %s299
        // Predicated region
        $region41: #{tpu_custom_call.1} parent=39 // pred_check
          %p301 = pneg %p52
        $region42: #{tpu_custom_call.1} parent=39 // pred_check_branch
          %303 = sbr.rel (%p301) target = $region44
        $region43: #{tpu_custom_call.1} parent=39 // pred_region
          %305 = dma.done %s297, 768
        $region44: #{tpu_custom_call.1} parent=39 // pred_fallthru
          _
        %s306 = sand.u32 %s31, 1
        %s307 = scalar_lea.sflag [#allocation6], %s306
        %s308 = sand.u32 %s65, 1
        %s309 = smul.addr %s308, 80
        %s310 = scalar_lea.vmem [#allocation5], %s309
        // Predicated region
        $region45: #{tpu_custom_call.1} parent=39 // pred_check
          %p311 = pneg %p78
        $region46: #{tpu_custom_call.1} parent=39 // pred_check_branch
          %313 = sbr.rel (%p311) target = $region48
        $region47: #{tpu_custom_call.1} parent=39 // pred_region
          %315 = dma.done %s307, 1280
        $region48: #{tpu_custom_call.1} parent=39 // pred_fallthru
          _
        // Predicated region
        $region49: #{tpu_custom_call.1} parent=39 // pred_check
          %p316 = pneg %p99
        $region50: #{tpu_custom_call.1} parent=39 // pred_check_branch
          %318 = sbr.rel (%p316) target = $region52
        $region51: #{tpu_custom_call.1} parent=39 // pred_region
          %320 = dma.done [#allocation6], 6144
        $region52: #{tpu_custom_call.1} parent=39 // pred_fallthru
          _
        // Predicated region
        $region53: #{tpu_custom_call.1} parent=39 // pred_check
          %p321 = pneg %p120
        $region54: #{tpu_custom_call.1} parent=39 // pred_check_branch
          %323 = sbr.rel (%p321) target = $region56
        $region55: #{tpu_custom_call.1} parent=39 // pred_region
          %325 = dma.done [#allocation9], 10240
        $region56: #{tpu_custom_call.1} parent=39 // pred_fallthru
          _
        %s326 = sand.u32 %s39, 1
        %s327 = scalar_lea.sflag [#allocation3], %s326
        %s328 = sand.u32 %s39, 1
        %s329 = smul.addr %s328, 48
        %s330 = scalar_lea.vmem [#allocation2], %s329
        %p331 = pneg %p52
        %p332 = pneg %p49
        %s333 = sand.u32 %s31, 1
        %s334 = scalar_lea.sflag [#allocation6], %s333
        %s335 = sand.u32 %s65, 1
        %s336 = smul.addr %s335, 80
        %s337 = scalar_lea.vmem [#allocation5], %s336
        %p338 = pneg %p78
        %p339 = pneg %p75
        %p340 = pneg %p99
        %p341 = pneg %p96
        %p342 = pneg %p120
        %p343 = pneg %p117
        %p344 = pneg %p141
        %p345 = pneg %p138
        %p346 = pneg %p167
        %p347 = pneg %p164
        %s348 = sand.u32 %s154, 1
        %s349 = scalar_lea.sflag [#allocation4], %s348
        %s350 = sand.u32 %s154, 1
        %s351 = smul.addr %s350, 16
        %s352 = scalar_lea.vmem [#allocation10], %s351
        %p353 = pneg %p193
        %p354 = pneg %p190
        %s355 = sand.u32 %s180, 1
        %s356 = scalar_lea.sflag [#allocation12], %s355
        %s357 = sand.u32 %s180, 1
        %s358 = smul.addr %s357, 8
        %s359 = scalar_lea.vmem [#allocation11], %s358
        %s360 = smul.u32 2, %s31
        %s361 = smul.u32 2, %s31
        %s362 = smul.u32 2, %s31
        %v363 = vld [vmem:[%s300] sm:$0xff]
        %v364 = vld [vmem:[%s300 + $0x8] sm:$0xff]
        %v365 = vld [vmem:[%s300 + $0x10] sm:$0xff]
        %v366 = vld [vmem:[%s300 + $0x18] sm:$0xff]
        %v367 = vld [vmem:[%s300 + $0x20] sm:$0xff]
        %v368 = vld [vmem:[%s300 + $0x28] sm:$0xff]
        %v369 = vld [vmem:[#allocation7] sm:$0xff]
        %v370 = vld [vmem:[#allocation7 + $0x8] sm:$0xff]
        %v371 = vld [vmem:[#allocation7 + $0x10] sm:$0xff]
        %v372 = vld [vmem:[#allocation7 + $0x18] sm:$0xff]
        %v373 = vld [vmem:[#allocation7 + $0x20] sm:$0xff]
        %v374 = vld [vmem:[#allocation7 + $0x28] sm:$0xff]
        %v375 = vld [vmem:[#allocation7 + $0x30] sm:$0xff]
        %v376 = vld [vmem:[#allocation7 + $0x38] sm:$0xff]
        %v377 = vld [vmem:[#allocation7 + $0x40] sm:$0xff]
        %v378 = vld [vmem:[#allocation7 + $0x48] sm:$0xff]
        %v379 = vld [vmem:[#allocation7 + $0x50] sm:$0xff]
        %v380 = vld [vmem:[#allocation7 + $0x58] sm:$0xff]
        %v381 = vld [vmem:[#allocation7 + $0x60] sm:$0xff]
        %v382 = vld [vmem:[#allocation7 + $0x68] sm:$0xff]
        %v383 = vld [vmem:[#allocation7 + $0x70] sm:$0xff]
        %v384 = vld [vmem:[#allocation7 + $0x78] sm:$0xff]
        %v385 = vld [vmem:[#allocation7 + $0x80] sm:$0xff]
        %v386 = vld [vmem:[#allocation7 + $0x88] sm:$0xff]
        %v387 = vld [vmem:[#allocation7 + $0x90] sm:$0xff]
        %v388 = vld [vmem:[#allocation7 + $0x98] sm:$0xff]
        %v389 = vld [vmem:[#allocation7 + $0xa0] sm:$0xff]
        %v390 = vld [vmem:[#allocation7 + $0xa8] sm:$0xff]
        %v391 = vld [vmem:[#allocation7 + $0xb0] sm:$0xff]
        %v392 = vld [vmem:[#allocation7 + $0xb8] sm:$0xff]
        %v393 = vld [vmem:[#allocation7 + $0xc0] sm:$0xff]
        %v394 = vld [vmem:[#allocation7 + $0xc8] sm:$0xff]
        %v395 = vld [vmem:[#allocation7 + $0xd0] sm:$0xff]
        %v396 = vld [vmem:[#allocation7 + $0xd8] sm:$0xff]
        %v397 = vld [vmem:[#allocation7 + $0xe0] sm:$0xff]
        %v398 = vld [vmem:[#allocation7 + $0xe8] sm:$0xff]
        %v399 = vld [vmem:[#allocation7 + $0xf0] sm:$0xff]
        %v400 = vld [vmem:[#allocation7 + $0xf8] sm:$0xff]
        %v401 = vld [vmem:[#allocation7 + $0x100] sm:$0xff]
        %v402 = vld [vmem:[#allocation7 + $0x108] sm:$0xff]
        %v403 = vld [vmem:[#allocation7 + $0x110] sm:$0xff]
        %v404 = vld [vmem:[#allocation7 + $0x118] sm:$0xff]
        %v405 = vld [vmem:[#allocation7 + $0x120] sm:$0xff]
        %v406 = vld [vmem:[#allocation7 + $0x128] sm:$0xff]
        %v407 = vld [vmem:[#allocation7 + $0x130] sm:$0xff]
        %v408 = vld [vmem:[#allocation7 + $0x138] sm:$0xff]
        %v409 = vld [vmem:[#allocation7 + $0x140] sm:$0xff]
        %v410 = vld [vmem:[#allocation7 + $0x148] sm:$0xff]
        %v411 = vld [vmem:[#allocation7 + $0x150] sm:$0xff]
        %v412 = vld [vmem:[#allocation7 + $0x158] sm:$0xff]
        %v413 = vld [vmem:[#allocation7 + $0x160] sm:$0xff]
        %v414 = vld [vmem:[#allocation7 + $0x168] sm:$0xff]
        %v415 = vld [vmem:[#allocation7 + $0x170] sm:$0xff]
        %v416 = vld [vmem:[#allocation7 + $0x178] sm:$0xff]
        %v417 = vld [vmem:[%s310] sm:$0xff]
        %v418 = vld [vmem:[%s310 + $0x8] sm:$0xff]
        %v419 = vld [vmem:[%s310 + $0x10] sm:$0xff]
        %v420 = vld [vmem:[%s310 + $0x18] sm:$0xff]
        %v421 = vld [vmem:[%s310 + $0x20] sm:$0xff]
        %v422 = vld [vmem:[%s310 + $0x28] sm:$0xff]
        %v423 = vld [vmem:[%s310 + $0x30] sm:$0xff]
        %v424 = vld [vmem:[%s310 + $0x38] sm:$0xff]
        %v425 = vld [vmem:[%s310 + $0x40] sm:$0xff]
        %v426 = vld [vmem:[%s310 + $0x48] sm:$0xff]
        %v427 = vld [vmem:[#allocation8] sm:$0xff]
        %v428 = vld [vmem:[#allocation8 + $0x8] sm:$0xff]
        %v429 = vld [vmem:[#allocation8 + $0x10] sm:$0xff]
        %v430 = vld [vmem:[#allocation8 + $0x18] sm:$0xff]
        %v431 = vld [vmem:[#allocation8 + $0x20] sm:$0xff]
        %v432 = vld [vmem:[#allocation8 + $0x28] sm:$0xff]
        %v433 = vld [vmem:[#allocation8 + $0x30] sm:$0xff]
        %v434 = vld [vmem:[#allocation8 + $0x38] sm:$0xff]
        %v435 = vld [vmem:[#allocation8 + $0x40] sm:$0xff]
        %v436 = vld [vmem:[#allocation8 + $0x48] sm:$0xff]
        %v437 = vld [vmem:[#allocation8 + $0x50] sm:$0xff]
        %v438 = vld [vmem:[#allocation8 + $0x58] sm:$0xff]
        %v439 = vld [vmem:[#allocation8 + $0x60] sm:$0xff]
        %v440 = vld [vmem:[#allocation8 + $0x68] sm:$0xff]
        %v441 = vld [vmem:[#allocation8 + $0x70] sm:$0xff]
        %v442 = vld [vmem:[#allocation8 + $0x78] sm:$0xff]
        %v443 = vld [vmem:[#allocation8 + $0x80] sm:$0xff]
        %v444 = vld [vmem:[#allocation8 + $0x88] sm:$0xff]
        %v445 = vld [vmem:[#allocation8 + $0x90] sm:$0xff]
        %v446 = vld [vmem:[#allocation8 + $0x98] sm:$0xff]
        %v447 = vld [vmem:[#allocation8 + $0xa0] sm:$0xff]
        %v448 = vld [vmem:[#allocation8 + $0xa8] sm:$0xff]
        %v449 = vld [vmem:[#allocation8 + $0xb0] sm:$0xff]
        %v450 = vld [vmem:[#allocation8 + $0xb8] sm:$0xff]
        %v451 = vld [vmem:[#allocation8 + $0xc0] sm:$0xff]
        %v452 = vld [vmem:[#allocation8 + $0xc8] sm:$0xff]
        %v453 = vld [vmem:[#allocation8 + $0xd0] sm:$0xff]
        %v454 = vld [vmem:[#allocation8 + $0xd8] sm:$0xff]
        %v455 = vld [vmem:[#allocation8 + $0xe0] sm:$0xff]
        %v456 = vld [vmem:[#allocation8 + $0xe8] sm:$0xff]
        %v457 = vld [vmem:[#allocation8 + $0xf0] sm:$0xff]
        %v458 = vld [vmem:[#allocation8 + $0xf8] sm:$0xff]
        %v459 = vld [vmem:[#allocation8 + $0x100] sm:$0xff]
        %v460 = vld [vmem:[#allocation8 + $0x108] sm:$0xff]
        %v461 = vld [vmem:[#allocation8 + $0x110] sm:$0xff]
        %v462 = vld [vmem:[#allocation8 + $0x118] sm:$0xff]
        %v463 = vld [vmem:[#allocation8 + $0x120] sm:$0xff]
        %v464 = vld [vmem:[#allocation8 + $0x128] sm:$0xff]
        %v465 = vld [vmem:[#allocation8 + $0x130] sm:$0xff]
        %v466 = vld [vmem:[#allocation8 + $0x138] sm:$0xff]
        %v467 = vld [vmem:[#allocation8 + $0x140] sm:$0xff]
        %v468 = vld [vmem:[#allocation8 + $0x148] sm:$0xff]
        %v469 = vld [vmem:[#allocation8 + $0x150] sm:$0xff]
        %v470 = vld [vmem:[#allocation8 + $0x158] sm:$0xff]
        %v471 = vld [vmem:[#allocation8 + $0x160] sm:$0xff]
        %v472 = vld [vmem:[#allocation8 + $0x168] sm:$0xff]
        %v473 = vld [vmem:[#allocation8 + $0x170] sm:$0xff]
        %v474 = vld [vmem:[#allocation8 + $0x178] sm:$0xff]
        %v475 = vld [vmem:[#allocation8 + $0x180] sm:$0xff]
        %v476 = vld [vmem:[#allocation8 + $0x188] sm:$0xff]
        %v477 = vld [vmem:[#allocation8 + $0x190] sm:$0xff]
        %v478 = vld [vmem:[#allocation8 + $0x198] sm:$0xff]
        %v479 = vld [vmem:[#allocation8 + $0x1a0] sm:$0xff]
        %v480 = vld [vmem:[#allocation8 + $0x1a8] sm:$0xff]
        %v481 = vld [vmem:[#allocation8 + $0x1b0] sm:$0xff]
        %v482 = vld [vmem:[#allocation8 + $0x1b8] sm:$0xff]
        %v483 = vld [vmem:[#allocation8 + $0x1c0] sm:$0xff]
        %v484 = vld [vmem:[#allocation8 + $0x1c8] sm:$0xff]
        %v485 = vld [vmem:[#allocation8 + $0x1d0] sm:$0xff]
        %v486 = vld [vmem:[#allocation8 + $0x1d8] sm:$0xff]
        %v487 = vld [vmem:[#allocation8 + $0x1e0] sm:$0xff]
        %v488 = vld [vmem:[#allocation8 + $0x1e8] sm:$0xff]
        %v489 = vld [vmem:[#allocation8 + $0x1f0] sm:$0xff]
        %v490 = vld [vmem:[#allocation8 + $0x1f8] sm:$0xff]
        %v491 = vld [vmem:[#allocation8 + $0x200] sm:$0xff]
        %v492 = vld [vmem:[#allocation8 + $0x208] sm:$0xff]
        %v493 = vld [vmem:[#allocation8 + $0x210] sm:$0xff]
        %v494 = vld [vmem:[#allocation8 + $0x218] sm:$0xff]
        %v495 = vld [vmem:[#allocation8 + $0x220] sm:$0xff]
        %v496 = vld [vmem:[#allocation8 + $0x228] sm:$0xff]
        %v497 = vld [vmem:[#allocation8 + $0x230] sm:$0xff]
        %v498 = vld [vmem:[#allocation8 + $0x238] sm:$0xff]
        %v499 = vld [vmem:[#allocation8 + $0x240] sm:$0xff]
        %v500 = vld [vmem:[#allocation8 + $0x248] sm:$0xff]
        %v501 = vld [vmem:[#allocation8 + $0x250] sm:$0xff]
        %v502 = vld [vmem:[#allocation8 + $0x258] sm:$0xff]
        %v503 = vld [vmem:[#allocation8 + $0x260] sm:$0xff]
        %v504 = vld [vmem:[#allocation8 + $0x268] sm:$0xff]
        %v505 = vld [vmem:[#allocation8 + $0x270] sm:$0xff]
        %v506 = vld [vmem:[#allocation8 + $0x278] sm:$0xff]
        %507 = vmatpush.msra.mxu0 %v442
        %508 = vmatpush.msra.mxu0 %v441
        %509 = vmatpush.msra.mxu0 %v440
        %510 = vmatpush.msra.mxu0 %v439
        %511 = vmatpush.msra.mxu0 %v438
        %512 = vmatpush.msra.mxu0 %v437
        %513 = vmatpush.msra.mxu0 %v436
        %514 = vmatpush.msra.mxu0 %v435
        %515 = vmatpush.msra.mxu0 %v434
        %516 = vmatpush.msra.mxu0 %v433
        %517 = vmatpush.msra.mxu0 %v432
        %518 = vmatpush.msra.mxu0 %v431
        %519 = vmatpush.msra.mxu0 %v430
        %520 = vmatpush.msra.mxu0 %v429
        %521 = vmatpush.msra.mxu0 %v428
        %522 = vmatpush.msra.mxu0 %v427
        %523 = vmatmul.f32.gmra.mxu0 %v417
        %v524 = vpop.f32.mrf.mxu0
        %v525 = vadd.f32 0.0, %v524
        %526 = vmatmul.f32.gmra.mxu0 %v422
        %v527 = vpop.f32.mrf.mxu0
        %v528 = vadd.f32 0.0, %v527
        %529 = vdwg.mxu0
        %530 = vmatpush.msra.mxu0 %v458
        %531 = vmatpush.msra.mxu0 %v457
        %532 = vmatpush.msra.mxu0 %v456
        %533 = vmatpush.msra.mxu0 %v455
        %534 = vmatpush.msra.mxu0 %v454
        %535 = vmatpush.msra.mxu0 %v453
        %536 = vmatpush.msra.mxu0 %v452
        %537 = vmatpush.msra.mxu0 %v451
        %538 = vmatpush.msra.mxu0 %v450
        %539 = vmatpush.msra.mxu0 %v449
        %540 = vmatpush.msra.mxu0 %v448
        %541 = vmatpush.msra.mxu0 %v447
        %542 = vmatpush.msra.mxu0 %v446
        %543 = vmatpush.msra.mxu0 %v445
        %544 = vmatpush.msra.mxu0 %v444
        %545 = vmatpush.msra.mxu0 %v443
        %546 = vmatmul.f32.gmra.mxu0 %v418
        %v547 = vpop.f32.mrf.mxu0
        %v548 = vadd.f32 %v525, %v547
        %549 = vmatmul.f32.gmra.mxu0 %v423
        %v550 = vpop.f32.mrf.mxu0
        %v551 = vadd.f32 %v528, %v550
        %552 = vdwg.mxu0
        %553 = vmatpush.msra.mxu0 %v474
        %554 = vmatpush.msra.mxu0 %v473
        %555 = vmatpush.msra.mxu0 %v472
        %556 = vmatpush.msra.mxu0 %v471
        %557 = vmatpush.msra.mxu0 %v470
        %558 = vmatpush.msra.mxu0 %v469
        %559 = vmatpush.msra.mxu0 %v468
        %560 = vmatpush.msra.mxu0 %v467
        %561 = vmatpush.msra.mxu0 %v466
        %562 = vmatpush.msra.mxu0 %v465
        %563 = vmatpush.msra.mxu0 %v464
        %564 = vmatpush.msra.mxu0 %v463
        %565 = vmatpush.msra.mxu0 %v462
        %566 = vmatpush.msra.mxu0 %v461
        %567 = vmatpush.msra.mxu0 %v460
        %568 = vmatpush.msra.mxu0 %v459
        %569 = vmatmul.f32.gmra.mxu0 %v419
        %v570 = vpop.f32.mrf.mxu0
        %v571 = vadd.f32 %v548, %v570
        %572 = vmatmul.f32.gmra.mxu0 %v424
        %v573 = vpop.f32.mrf.mxu0
        %v574 = vadd.f32 %v551, %v573
        %575 = vdwg.mxu0
        %576 = vmatpush.msra.mxu0 %v490
        %577 = vmatpush.msra.mxu0 %v489
        %578 = vmatpush.msra.mxu0 %v488
        %579 = vmatpush.msra.mxu0 %v487
        %580 = vmatpush.msra.mxu0 %v486
        %581 = vmatpush.msra.mxu0 %v485
        %582 = vmatpush.msra.mxu0 %v484
        %583 = vmatpush.msra.mxu0 %v483
        %584 = vmatpush.msra.mxu0 %v482
        %585 = vmatpush.msra.mxu0 %v481
        %586 = vmatpush.msra.mxu0 %v480
        %587 = vmatpush.msra.mxu0 %v479
        %588 = vmatpush.msra.mxu0 %v478
        %589 = vmatpush.msra.mxu0 %v477
        %590 = vmatpush.msra.mxu0 %v476
        %591 = vmatpush.msra.mxu0 %v475
        %592 = vmatmul.f32.gmra.mxu0 %v420
        %v593 = vpop.f32.mrf.mxu0
        %v594 = vadd.f32 %v571, %v593
        %595 = vmatmul.f32.gmra.mxu0 %v425
        %v596 = vpop.f32.mrf.mxu0
        %v597 = vadd.f32 %v574, %v596
        %598 = vdwg.mxu0
        %599 = vmatpush.msra.mxu0 %v506
        %600 = vmatpush.msra.mxu0 %v505
        %601 = vmatpush.msra.mxu0 %v504
        %602 = vmatpush.msra.mxu0 %v503
        %603 = vmatpush.msra.mxu0 %v502
        %604 = vmatpush.msra.mxu0 %v501
        %605 = vmatpush.msra.mxu0 %v500
        %606 = vmatpush.msra.mxu0 %v499
        %607 = vmatpush.msra.mxu0 %v498
        %608 = vmatpush.msra.mxu0 %v497
        %609 = vmatpush.msra.mxu0 %v496
        %610 = vmatpush.msra.mxu0 %v495
        %611 = vmatpush.msra.mxu0 %v494
        %612 = vmatpush.msra.mxu0 %v493
        %613 = vmatpush.msra.mxu0 %v492
        %614 = vmatpush.msra.mxu0 %v491
        %615 = vmatmul.f32.gmra.mxu0 %v421
        %v616 = vpop.f32.mrf.mxu0
        %v617 = vadd.f32 %v594, %v616
        %618 = vmatmul.f32.gmra.mxu0 %v426
        %v619 = vpop.f32.mrf.mxu0
        %v620 = vadd.f32 %v597, %v619
        %621 = vdwg.mxu0
        %622 = vmatpush.msra.mxu0 %v384
        %623 = vmatpush.msra.mxu0 %v383
        %624 = vmatpush.msra.mxu0 %v382
        %625 = vmatpush.msra.mxu0 %v381
        %626 = vmatpush.msra.mxu0 %v380
        %627 = vmatpush.msra.mxu0 %v379
        %628 = vmatpush.msra.mxu0 %v378
        %629 = vmatpush.msra.mxu0 %v377
        %630 = vmatpush.msra.mxu0 %v376
        %631 = vmatpush.msra.mxu0 %v375
        %632 = vmatpush.msra.mxu0 %v374
        %633 = vmatpush.msra.mxu0 %v373
        %634 = vmatpush.msra.mxu0 %v372
        %635 = vmatpush.msra.mxu0 %v371
        %636 = vmatpush.msra.mxu0 %v370
        %637 = vmatpush.msra.mxu0 %v369
        %638 = vmatmul.f32.gmra.mxu0 %v363
        %v639 = vpop.f32.mrf.mxu0
        %v640 = vadd.f32 %v617, %v639
        %641 = vmatmul.f32.gmra.mxu0 %v366
        %v642 = vpop.f32.mrf.mxu0
        %v643 = vadd.f32 %v620, %v642
        %644 = vdwg.mxu0
        %645 = vmatpush.msra.mxu0 %v400
        %646 = vmatpush.msra.mxu0 %v399
        %647 = vmatpush.msra.mxu0 %v398
        %648 = vmatpush.msra.mxu0 %v397
        %649 = vmatpush.msra.mxu0 %v396
        %650 = vmatpush.msra.mxu0 %v395
        %651 = vmatpush.msra.mxu0 %v394
        %652 = vmatpush.msra.mxu0 %v393
        %653 = vmatpush.msra.mxu0 %v392
        %654 = vmatpush.msra.mxu0 %v391
        %655 = vmatpush.msra.mxu0 %v390
        %656 = vmatpush.msra.mxu0 %v389
        %657 = vmatpush.msra.mxu0 %v388
        %658 = vmatpush.msra.mxu0 %v387
        %659 = vmatpush.msra.mxu0 %v386
        %660 = vmatpush.msra.mxu0 %v385
        %661 = vmatmul.f32.gmra.mxu0 %v364
        %v662 = vpop.f32.mrf.mxu0
        %v663 = vadd.f32 %v640, %v662
        %664 = vmatmul.f32.gmra.mxu0 %v367
        %v665 = vpop.f32.mrf.mxu0
        %v666 = vadd.f32 %v643, %v665
        %667 = vdwg.mxu0
        %668 = vmatpush.msra.mxu0 %v416
        %669 = vmatpush.msra.mxu0 %v415
        %670 = vmatpush.msra.mxu0 %v414
        %671 = vmatpush.msra.mxu0 %v413
        %672 = vmatpush.msra.mxu0 %v412
        %673 = vmatpush.msra.mxu0 %v411
        %674 = vmatpush.msra.mxu0 %v410
        %675 = vmatpush.msra.mxu0 %v409
        %676 = vmatpush.msra.mxu0 %v408
        %677 = vmatpush.msra.mxu0 %v407
        %678 = vmatpush.msra.mxu0 %v406
        %679 = vmatpush.msra.mxu0 %v405
        %680 = vmatpush.msra.mxu0 %v404
        %681 = vmatpush.msra.mxu0 %v403
        %682 = vmatpush.msra.mxu0 %v402
        %683 = vmatpush.msra.mxu0 %v401
        %684 = vmatmul.f32.gmra.mxu0 %v365
        %v685 = vpop.f32.mrf.mxu0
        %v686 = vadd.f32 %v663, %v685
        %687 = vmatmul.f32.gmra.mxu0 %v368
        %v688 = vpop.f32.mrf.mxu0
        %v689 = vadd.f32 %v666, %v688
        %690 = vdwg.mxu0
        %v691 = vld [vmem:[%s4] sm:$0x1]
        %v693 = vperm.slane %v691, 0
        %v695 = vadd.f32 %v686, %v693
        %v696 = vadd.f32 %v689, %v693
        %697 = vst [vmem:[%s352] sm:$0xff] %v695
        %698 = vst [vmem:[%s352 + $0x8] sm:$0xff] %v696
        %699 = vst [vmem:[%s359 + $0x2] sm:$0x3f] 0.0
        %p700 = scmp.ne.s32.totalorder %s31, 1
        // Predicated region
        $region57: #{tpu_custom_call.1} parent=39 // pred_check
          %p701 = pneg %p700
        $region58: #{tpu_custom_call.1} parent=39 // pred_check_branch
          %703 = sbr.rel (%p701) target = $region60
        $region59: #{tpu_custom_call.1} parent=39 // pred_region
          %v704 = vadd.f32 %v686, %v689
          %v705 = vrot.slane %v704, 4
          %v706 = vadd.f32 %v704, %v705
          %v707 = vrot.slane %v706, 2
          %v708 = vadd.f32 %v706, %v707
          %v709 = vrot.slane %v708, 1
          %v710 = vadd.f32 %v708, %v709
          %711 = vst [vmem:[%s359] sm:$0x1] %v710
          %v712 = vmul.f32 %v686, %v686
          %v713 = vmul.f32 %v689, %v689
          %v714 = vadd.f32 %v712, %v713
          %v715 = vrot.slane %v714, 4
          %v716 = vadd.f32 %v714, %v715
          %v717 = vrot.slane %v716, 2
          %v718 = vadd.f32 %v716, %v717
          %v719 = vrot.slane %v718, 1
          %v720 = vadd.f32 %v718, %v719
          %721 = vst [vmem:[%s359 + $0x1] sm:$0x1] %v720
        $region60: #{tpu_custom_call.1} parent=39 // pred_fallthru
          _
        %p722 = scmp.eq.s32.totalorder %s31, 1
        // Predicated region
        $region61: #{tpu_custom_call.1} parent=39 // pred_check
          %p723 = pneg %p722
        $region62: #{tpu_custom_call.1} parent=39 // pred_check_branch
          %725 = sbr.rel (%p723) target = $region64
        $region63: #{tpu_custom_call.1} parent=39 // pred_region
          %v726 = vlaneseq
          %v727 = vshrl.u32 %v726, 7
          %v728 = vadd.s32 %v727, 8
          %vm729 = vcmp.lt.s32.totalorder %v727, 4
          %vm730 = vcmp.lt.s32.totalorder %v728, 4
          %v731 = vsel %vm729, 1, 0
          %v732 = vsel %vm730, 1, 0
          %v733 = vcvt.s32.f32 %v731
          %v734 = vcvt.s32.f32 %v732
          %v735 = vmul.f32 %v686, %v733
          %v736 = vmul.f32 %v689, %v734
          %v737 = vadd.f32 %v735, %v736
          %v738 = vrot.slane %v737, 4
          %v739 = vadd.f32 %v737, %v738
          %v740 = vrot.slane %v739, 2
          %v741 = vadd.f32 %v739, %v740
          %v742 = vrot.slane %v741, 1
          %v743 = vadd.f32 %v741, %v742
          %744 = vst [vmem:[%s359] sm:$0x1] %v743
          %v745 = vmul.f32 %v735, %v686
          %v746 = vmul.f32 %v736, %v689
          %v747 = vadd.f32 %v745, %v746
          %v748 = vrot.slane %v747, 4
          %v749 = vadd.f32 %v747, %v748
          %v750 = vrot.slane %v749, 2
          %v751 = vadd.f32 %v749, %v750
          %v752 = vrot.slane %v751, 1
          %v753 = vadd.f32 %v751, %v752
          %754 = vst [vmem:[%s359 + $0x1] sm:$0x1] %v753
        $region64: #{tpu_custom_call.1} parent=39 // pred_fallthru
          _
        %s755 = sand.u32 %s154, 1
        %s756 = scalar_lea.sflag [#allocation4], %s755
        %s757 = sand.u32 %s154, 1
        %s758 = smul.addr %s757, 16
        %s759 = scalar_lea.vmem [#allocation10], %s758
        %s760 = sand.u32 %s180, 1
        %s761 = scalar_lea.sflag [#allocation12], %s760
        %s762 = sand.u32 %s180, 1
        %s763 = smul.addr %s762, 8
        %s764 = scalar_lea.vmem [#allocation11], %s763
        // Predicated region
        $region65: #{tpu_custom_call.1} parent=39 // pred_check
          %p765 = pneg %p164
        $region66: #{tpu_custom_call.1} parent=39 // pred_check_branch
          %767 = sbr.rel (%p765) target = $region68
        $region67: #{tpu_custom_call.1} parent=39 // pred_region
          %s768 = smul.u32 2, %s31
          %770 = vsyncadd %s756, 0
          %s771 = smul.addr %s768, 8
          %s772 = scalar_lea.hbm %s5, %s771
          %s773 = sshll.u32 %s759, 4
          %s774 = int_to_ptr.vmem [resolvable:$true] %s773
          %s775 = sshll.u32 %s772, 4
          %s776 = int_to_ptr.hbm [resolvable:$true] %s775
          %781 = dma.vmem_to_hbm [thread:$0]  %s774, 256, %s776, %s756, 128, 128, 8
        $region68: #{tpu_custom_call.1} parent=39 // pred_fallthru
          _
        // Predicated region
        $region69: #{tpu_custom_call.1} parent=39 // pred_check
          %p782 = pneg %p190
        $region70: #{tpu_custom_call.1} parent=39 // pred_check_branch
          %784 = sbr.rel (%p782) target = $region72
        $region71: #{tpu_custom_call.1} parent=39 // pred_region
          %786 = vsyncadd %s761, 0
          %s787 = smul.addr %s31, 8
          %s788 = scalar_lea.hbm %s6, %s787
          %s790 = sshll.u32 %s764, 4
          %s791 = int_to_ptr.vmem [resolvable:$true] %s790
          %s792 = sshll.u32 %s788, 4
          %s793 = int_to_ptr.hbm [resolvable:$true] %s792
          %795 = dma.vmem_to_hbm [thread:$0]  %s791, 128, %s793, %s761
        $region72: #{tpu_custom_call.1} parent=39 // pred_fallthru
          _
      $region40: #{tpu_custom_call.1} parent=5 // pred_fallthru
        _
      %p796 = scmp.le.s32.totalorder 2, %s26
      // Predicated region
      $region73: #{tpu_custom_call.1} parent=5 // pred_check
        %p797 = pneg %p796
      $region74: #{tpu_custom_call.1} parent=5 // pred_check_branch
        %799 = sbr.rel (%p797) target = $region76
      $region75: #{tpu_custom_call.1} parent=5 // pred_region
        %s800 = ssub.s32 %s26, 2
        // Predicated region
        $region77: #{tpu_custom_call.1} parent=75 // pred_check
          %p801 = pneg %p170
        $region78: #{tpu_custom_call.1} parent=75 // pred_check_branch
          %803 = sbr.rel (%p801) target = $region80
        $region79: #{tpu_custom_call.1} parent=75 // pred_region
          %s804 = sand.u32 %s155, 1
          %s805 = scalar_lea.sflag [#allocation4], %s804
          %s806 = sand.u32 %s155, 1
          %s807 = smul.addr %s806, 16
          %s808 = scalar_lea.vmem [#allocation10], %s807
          %810 = dma.done %s805, 256
        $region80: #{tpu_custom_call.1} parent=75 // pred_fallthru
          _
        // Predicated region
        $region81: #{tpu_custom_call.1} parent=75 // pred_check
          %p811 = pneg %p196
        $region82: #{tpu_custom_call.1} parent=75 // pred_check_branch
          %813 = sbr.rel (%p811) target = $region84
        $region83: #{tpu_custom_call.1} parent=75 // pred_region
          %s814 = sand.u32 %s181, 1
          %s815 = scalar_lea.sflag [#allocation12], %s814
          %s816 = sand.u32 %s181, 1
          %s817 = smul.addr %s816, 8
          %s818 = scalar_lea.vmem [#allocation11], %s817
          %820 = dma.done %s815, 128
        $region84: #{tpu_custom_call.1} parent=75 // pred_fallthru
          _
      $region76: #{tpu_custom_call.1} parent=5 // pred_fallthru
        _
    $region6: #{tpu_custom_call.1} parent=1 // loop_footer
      %s30 = sadd.s32 1, %s26
    $region7: #{tpu_custom_call.1} parent=1 // loop_footer_branch
      %25 = sbr.rel target = $region3
    $region8: #{tpu_custom_call.1} parent=1 // loop_exit
      _
    %821 = vsyncpa [#allocation3], 1
    %s822 = scalar_lea.sflag [#allocation3], 1
    %823 = vsyncpa %s822, 1
    %824 = vsyncpa [#allocation6], 1
    %s825 = scalar_lea.sflag [#allocation6], 1
    %826 = vsyncpa %s825, 1
    %827 = vsyncpa [#allocation9], 1
    %828 = vsyncpa [#allocation4], 1
    %s829 = scalar_lea.sflag [#allocation4], 1
    %830 = vsyncpa %s829, 1
    %831 = vsyncpa [#allocation12], 1
    %s832 = scalar_lea.sflag [#allocation12], 1
    %833 = vsyncpa %s832, 1

// kernel: tpu_custom_call.1
$region0: #{tpu_custom_call.1}
  #allocation0 [shape = 'u32[]', space=smem, size = 0x4, offset = 0x4, fixed_abs, tag = 'smem constant byte address 0x4 - core index']
  #allocation1 [shape = 'u32[72,128]{1,0:T(1,128)}', space=vmem, size = 0x9000, scoped, tag = 'internal scratch']
  %s0 = inlined_call_operand.hbm [shape: f32[32,384], index: 0, kind: input, shape index: {}]
  %s1 = inlined_call_operand.hbm [shape: f32[32,640], index: 1, kind: input, shape index: {}]
  %s2 = inlined_call_operand.hbm [shape: f32[384,128], index: 2, kind: input, shape index: {}]
  %s3 = inlined_call_operand.hbm [shape: f32[640,128], index: 3, kind: input, shape index: {}]
  %s4 = inlined_call_operand.vmem [shape: f32[1,128], index: 4, kind: input, shape index: {}]
  %s5 = inlined_call_operand.hbm [shape: f32[32,128], index: 5, kind: output, shape index: {0}]
  %s6 = inlined_call_operand.hbm [shape: f32[16,128], index: 6, kind: output, shape index: {1}]
  %7 = xla_tuple %s5, %s6
  %s8 = sld [smem:[#allocation0]]
  $region85: #{tpu_custom_call.1} parent=0
    _
  %s10 = ssub.s32 1, %s8
  %s11 = scalar_select 0, %s10, %s8
  $region1: #{tpu_custom_call.1} parent=0
    #allocation2 [shape = 'u8[49152]{0}', space=vmem, size = 0xc000, scoped, tag = 'input window, operand 0']
    #allocation3 [shape = 's32[2]{0}', space=sflag, size = 0x8, scoped, tag = 'scoped memory for tpu_custom_call.1']
    #allocation4 [shape = 's32[2]{0}', space=sflag, size = 0x8, scoped, tag = 'scoped memory for tpu_custom_call.1']
    #allocation5 [shape = 'u8[81920]{0}', space=vmem, size = 0x14000, scoped, tag = 'input window, operand 1']
    #allocation6 [shape = 's32[2]{0}', space=sflag, size = 0x8, scoped, tag = 'scoped memory for tpu_custom_call.1']
    #allocation7 [shape = 'u8[196608]{0}', space=vmem, size = 0x30000, scoped, tag = 'input window, operand 2, single buffered']
    #allocation8 [shape = 'u8[327680]{0}', space=vmem, size = 0x50000, scoped, tag = 'input window, operand 3, single buffered']
    #allocation9 [shape = 's32[1]{0}', space=sflag, size = 0x4, scoped, tag = 'scoped memory for tpu_custom_call.1']
    #allocation10 [shape = 'u8[16384]{0}', space=vmem, size = 0x4000, scoped, tag = 'output window, operand 0']
    #allocation11 [shape = 'u8[8192]{0}', space=vmem, size = 0x2000, scoped, tag = 'output window, operand 1']
    #allocation12 [shape = 's32[2]{0}', space=sflag, size = 0x8, scoped, tag = 'scoped memory for tpu_custom_call.1']
    %12 = vsyncpa [#allocation3], 0
    %s13 = scalar_lea.sflag [#allocation3], 1
    %14 = vsyncpa %s13, 0
    %15 = vsyncpa [#allocation6], 0
    %s16 = scalar_lea.sflag [#allocation6], 1
    %17 = vsyncpa %s16, 0
    %18 = vsyncpa [#allocation9], 0
    %19 = vsyncpa [#allocation4], 0
    %s20 = scalar_lea.sflag [#allocation4], 1
    %21 = vsyncpa %s20, 0
    %22 = vsyncpa [#allocation12], 0
    %s23 = scalar_lea.sflag [#allocation12], 1
    %24 = vsyncpa %s23, 0
    loop: start=0, step=1, limit=4
    $region2: #{tpu_custom_call.1} parent=1 // loop_pre_header
      _
    $region3: #{tpu_custom_call.1} parent=1 // loop_header
      %s26 = sphi 0, %s30
      %p27 = scmp.ge.s32.totalorder %s26, 4
      %s36 = sphi 0, %s38
      %s39 = sphi 0, %s36
      %s40 = sphi 0, %s39
      %s56 = sphi 0, %s40
      %s62 = sphi 0, %s64
      %s65 = sphi 0, %s62
      %s66 = sphi 0, %s65
      %s82 = sphi 0, %s66
      %s86 = sphi 0, %s86
      %s88 = sphi 0, %s86
      %s89 = sphi 0, %s88
      %s103 = sphi 0, %s89
      %s107 = sphi 0, %s107
      %s109 = sphi 0, %s107
      %s110 = sphi 0, %s109
      %s124 = sphi 0, %s110
      %s128 = sphi 0, %s128
      %s130 = sphi 0, %s128
      %s131 = sphi 0, %s130
      %s145 = sphi 0, %s131
      %s151 = sphi 0, %s153
      %s154 = sphi 0, %s151
      %s155 = sphi 0, %s154
      %s171 = sphi 0, %s155
      %s177 = sphi 0, %s179
      %s180 = sphi 0, %s177
      %s181 = sphi 0, %s180
      %s197 = sphi 0, %s181
    $region4: #{tpu_custom_call.1} parent=1 // loop_header_branch
      %29 = sbr.rel (%p27) target = $region8
    $region5: #{tpu_custom_call.1} parent=1 // loop_body
      %s31 = ssub.s32 %s26, 1
      %s32 = ssub.s32 %s26, 2
      %s33 = sadd.s32 %s26, 1
      %s34 = ssub.s32 %s26, %s33
      %p35 = scmp.eq.s32.totalorder %s34, 0
      %s37 = sadd.s32 %s36, 1
      %s38 = scalar_select %p35, %s36, %s37
      %p41 = pneg %p35
      %p42 = scmp.eq.s32.totalorder %s26, 1
      %p43 = por %p41, %p42
      %p44 = scmp.ne.s32.totalorder %s36, %s39
      %p45 = scmp.eq.s32.totalorder %s26, 0
      %p46 = por %p44, %p45
      %p47 = scmp.ne.s32.totalorder %s36, %s39
      %p48 = scmp.eq.s32.totalorder %s31, 1
      %p49 = por %p47, %p48
      %p50 = scmp.ne.s32.totalorder %s39, %s40
      %p51 = scmp.eq.s32.totalorder %s31, 0
      %p52 = por %p50, %p51
      %p53 = scmp.ne.s32.totalorder %s39, %s40
      %p54 = scmp.eq.s32.totalorder %s32, 1
      %p55 = por %p53, %p54
      %p57 = scmp.ne.s32.totalorder %s40, %s56
      %p58 = scmp.eq.s32.totalorder %s32, 0
      %p59 = por %p57, %p58
      %s60 = ssub.s32 %s26, %s33
      %p61 = scmp.eq.s32.totalorder %s60, 0
      %s63 = sadd.s32 %s62, 1
      %s64 = scalar_select %p61, %s62, %s63
      %p67 = pneg %p61
      %p68 = scmp.eq.s32.totalorder %s26, 1
      %p69 = por %p67, %p68
      %p70 = scmp.ne.s32.totalorder %s62, %s65
      %p71 = scmp.eq.s32.totalorder %s26, 0
      %p72 = por %p70, %p71
      %p73 = scmp.ne.s32.totalorder %s62, %s65
      %p74 = scmp.eq.s32.totalorder %s31, 1
      %p75 = por %p73, %p74
      %p76 = scmp.ne.s32.totalorder %s65, %s66
      %p77 = scmp.eq.s32.totalorder %s31, 0
      %p78 = por %p76, %p77
      %p79 = scmp.ne.s32.totalorder %s65, %s66
      %p80 = scmp.eq.s32.totalorder %s32, 1
      %p81 = por %p79, %p80
      %p83 = scmp.ne.s32.totalorder %s66, %s82
      %p84 = scmp.eq.s32.totalorder %s32, 0
      %p85 = por %p83, %p84
      %s87 = sadd.s32 %s86, 1
      %p90 = scmp.eq.s32.totalorder %s26, 1
      %p91 = scmp.ne.s32.totalorder %s86, %s88
      %p92 = scmp.eq.s32.totalorder %s26, 0
      %p93 = por %p91, %p92
      %p94 = scmp.ne.s32.totalorder %s86, %s88
      %p95 = scmp.eq.s32.totalorder %s31, 1
      %p96 = por %p94, %p95
      %p97 = scmp.ne.s32.totalorder %s88, %s89
      %p98 = scmp.eq.s32.totalorder %s31, 0
      %p99 = por %p97, %p98
      %p100 = scmp.ne.s32.totalorder %s88, %s89
      %p101 = scmp.eq.s32.totalorder %s32, 1
      %p102 = por %p100, %p101
      %p104 = scmp.ne.s32.totalorder %s89, %s103
      %p105 = scmp.eq.s32.totalorder %s32, 0
      %p106 = por %p104, %p105
      %s108 = sadd.s32 %s107, 1
      %p111 = scmp.eq.s32.totalorder %s26, 1
      %p112 = scmp.ne.s32.totalorder %s107, %s109
      %p113 = scmp.eq.s32.totalorder %s26, 0
      %p114 = por %p112, %p113
      %p115 = scmp.ne.s32.totalorder %s107, %s109
      %p116 = scmp.eq.s32.totalorder %s31, 1
      %p117 = por %p115, %p116
      %p118 = scmp.ne.s32.totalorder %s109, %s110
      %p119 = scmp.eq.s32.totalorder %s31, 0
      %p120 = por %p118, %p119
      %p121 = scmp.ne.s32.totalorder %s109, %s110
      %p122 = scmp.eq.s32.totalorder %s32, 1
      %p123 = por %p121, %p122
      %p125 = scmp.ne.s32.totalorder %s110, %s124
      %p126 = scmp.eq.s32.totalorder %s32, 0
      %p127 = por %p125, %p126
      %s129 = sadd.s32 %s128, 1
      %p132 = scmp.eq.s32.totalorder %s26, 1
      %p133 = scmp.ne.s32.totalorder %s128, %s130
      %p134 = scmp.eq.s32.totalorder %s26, 0
      %p135 = por %p133, %p134
      %p136 = scmp.ne.s32.totalorder %s128, %s130
      %p137 = scmp.eq.s32.totalorder %s31, 1
      %p138 = por %p136, %p137
      %p139 = scmp.ne.s32.totalorder %s130, %s131
      %p140 = scmp.eq.s32.totalorder %s31, 0
      %p141 = por %p139, %p140
      %p142 = scmp.ne.s32.totalorder %s130, %s131
      %p143 = scmp.eq.s32.totalorder %s32, 1
      %p144 = por %p142, %p143
      %p146 = scmp.ne.s32.totalorder %s131, %s145
      %p147 = scmp.eq.s32.totalorder %s32, 0
      %p148 = por %p146, %p147
      %s149 = ssub.s32 %s26, %s33
      %p150 = scmp.eq.s32.totalorder %s149, 0
      %s152 = sadd.s32 %s151, 1
      %s153 = scalar_select %p150, %s151, %s152
      %p156 = pneg %p150
      %p157 = scmp.eq.s32.totalorder %s26, 1
      %p158 = por %p156, %p157
      %p159 = scmp.ne.s32.totalorder %s151, %s154
      %p160 = scmp.eq.s32.totalorder %s26, 0
      %p161 = por %p159, %p160
      %p162 = scmp.ne.s32.totalorder %s151, %s154
      %p163 = scmp.eq.s32.totalorder %s31, 1
      %p164 = por %p162, %p163
      %p165 = scmp.ne.s32.totalorder %s154, %s155
      %p166 = scmp.eq.s32.totalorder %s31, 0
      %p167 = por %p165, %p166
      %p168 = scmp.ne.s32.totalorder %s154, %s155
      %p169 = scmp.eq.s32.totalorder %s32, 1
      %p170 = por %p168, %p169
      %p172 = scmp.ne.s32.totalorder %s155, %s171
      %p173 = scmp.eq.s32.totalorder %s32, 0
      %p174 = por %p172, %p173
      %s175 = ssub.s32 %s26, %s33
      %p176 = scmp.eq.s32.totalorder %s175, 0
      %s178 = sadd.s32 %s177, 1
      %s179 = scalar_select %p176, %s177, %s178
      %p182 = pneg %p176
      %p183 = scmp.eq.s32.totalorder %s26, 1
      %p184 = por %p182, %p183
      %p185 = scmp.ne.s32.totalorder %s177, %s180
      %p186 = scmp.eq.s32.totalorder %s26, 0
      %p187 = por %p185, %p186
      %p188 = scmp.ne.s32.totalorder %s177, %s180
      %p189 = scmp.eq.s32.totalorder %s31, 1
      %p190 = por %p188, %p189
      %p191 = scmp.ne.s32.totalorder %s180, %s181
      %p192 = scmp.eq.s32.totalorder %s31, 0
      %p193 = por %p191, %p192
      %p194 = scmp.ne.s32.totalorder %s180, %s181
      %p195 = scmp.eq.s32.totalorder %s32, 1
      %p196 = por %p194, %p195
      %p198 = scmp.ne.s32.totalorder %s181, %s197
      %p199 = scmp.eq.s32.totalorder %s32, 0
      %p200 = por %p198, %p199
      %p201 = scmp.le.s32.totalorder 1, %s26
      %p202 = scmp.lt.s32.totalorder %s26, 3
      %p203 = pnand %p201, %p202
      %p204 = pneg %p203
      // Predicated region
      $region9: #{tpu_custom_call.1} parent=5 // pred_check
        _
      $region10: #{tpu_custom_call.1} parent=5 // pred_check_branch
        %206 = sbr.rel (%p203) target = $region12
      $region11: #{tpu_custom_call.1} parent=5 // pred_region
        %s207 = ssub.s32 %s26, 1
        // Predicated region
        $region13: #{tpu_custom_call.1} parent=11 // pred_check
          %p208 = pneg %p99
        $region14: #{tpu_custom_call.1} parent=11 // pred_check_branch
          %210 = sbr.rel (%p208) target = $region16
        $region15: #{tpu_custom_call.1} parent=11 // pred_region
          %212 = vsyncadd [#allocation6], 0
          %s213 = sshll.u32 %s2, 4
          %s214 = int_to_ptr.hbm [resolvable:$true] %s213
          %s215 = sshll.u32 [#allocation7], 4
          %s216 = int_to_ptr.vmem [resolvable:$true] %s215
          %221 = dma.hbm_to_vmem [thread:$0]  %s214, 6144, %s216, [#allocation6], 128, 128, 8
        $region16: #{tpu_custom_call.1} parent=11 // pred_fallthru
          _
        // Predicated region
        $region17: #{tpu_custom_call.1} parent=11 // pred_check
          %p222 = pneg %p120
        $region18: #{tpu_custom_call.1} parent=11 // pred_check_branch
          %224 = sbr.rel (%p222) target = $region20
        $region19: #{tpu_custom_call.1} parent=11 // pred_region
          %226 = vsyncadd [#allocation9], 0
          %s227 = sshll.u32 %s3, 4
          %s228 = int_to_ptr.hbm [resolvable:$true] %s227
          %s229 = sshll.u32 [#allocation8], 4
          %s230 = int_to_ptr.vmem [resolvable:$true] %s229
          %235 = dma.hbm_to_vmem [thread:$0]  %s228, 10240, %s230, [#allocation9], 128, 128, 8
        $region20: #{tpu_custom_call.1} parent=11 // pred_fallthru
          _
        // Predicated region
        $region21: #{tpu_custom_call.1} parent=11 // pred_check
          %p236 = pneg %p141
        $region22: #{tpu_custom_call.1} parent=11 // pred_check_branch
          %238 = sbr.rel (%p236) target = $region24
        $region23: #{tpu_custom_call.1} parent=11 // pred_region
          _
        $region24: #{tpu_custom_call.1} parent=11 // pred_fallthru
          _
      $region12: #{tpu_custom_call.1} parent=5 // pred_fallthru
        _
      %p239 = scmp.lt.s32.totalorder %s26, 2
      // Predicated region
      $region25: #{tpu_custom_call.1} parent=5 // pred_check
        %p240 = pneg %p239
      $region26: #{tpu_custom_call.1} parent=5 // pred_check_branch
        %242 = sbr.rel (%p240) target = $region28
      $region27: #{tpu_custom_call.1} parent=5 // pred_region
        // Predicated region
        $region29: #{tpu_custom_call.1} parent=27 // pred_check
          %p243 = pneg %p46
        $region30: #{tpu_custom_call.1} parent=27 // pred_check_branch
          %245 = sbr.rel (%p243) target = $region32
        $region31: #{tpu_custom_call.1} parent=27 // pred_region
          %s246 = sand.u32 %s36, 1
          %s247 = scalar_lea.sflag [#allocation3], %s246
          %s248 = sand.u32 %s36, 1
          %s249 = smul.addr %s248, 48
          %s250 = scalar_lea.vmem [#allocation2], %s249
          %s251 = smul.u32 2, %s26
          %253 = vsyncadd %s247, 0
          %s254 = smul.addr %s251, 3
          %s255 = smul.addr %s254, 8
          %s256 = scalar_lea.hbm %s0, %s255
          %s257 = sshll.u32 %s256, 4
          %s258 = int_to_ptr.hbm [resolvable:$true] %s257
          %s259 = sshll.u32 %s250, 4
          %s260 = int_to_ptr.vmem [resolvable:$true] %s259
          %265 = dma.hbm_to_vmem [thread:$0]  %s258, 768, %s260, %s247, 384, 384, 24
        $region32: #{tpu_custom_call.1} parent=27 // pred_fallthru
          _
        // Predicated region
        $region33: #{tpu_custom_call.1} parent=27 // pred_check
          %p266 = pneg %p72
        $region34: #{tpu_custom_call.1} parent=27 // pred_check_branch
          %268 = sbr.rel (%p266) target = $region36
        $region35: #{tpu_custom_call.1} parent=27 // pred_region
          %s269 = sand.u32 %s26, 1
          %s270 = scalar_lea.sflag [#allocation6], %s269
          %s271 = sand.u32 %s62, 1
          %s272 = smul.addr %s271, 80
          %s273 = scalar_lea.vmem [#allocation5], %s272
          %s274 = smul.u32 2, %s26
          %276 = vsyncadd %s270, 0
          %s277 = smul.addr %s274, 5
          %s278 = smul.addr %s277, 8
          %s279 = scalar_lea.hbm %s1, %s278
          %s280 = sshll.u32 %s279, 4
          %s281 = int_to_ptr.hbm [resolvable:$true] %s280
          %s282 = sshll.u32 %s273, 4
          %s283 = int_to_ptr.vmem [resolvable:$true] %s282
          %288 = dma.hbm_to_vmem [thread:$0]  %s281, 1280, %s283, %s270, 640, 640, 40
        $region36: #{tpu_custom_call.1} parent=27 // pred_fallthru
          _
      $region28: #{tpu_custom_call.1} parent=5 // pred_fallthru
        _
      %p289 = scmp.le.s32.totalorder 1, %s26
      %p290 = scmp.lt.s32.totalorder %s26, 3
      %p291 = pnand %p289, %p290
      %p292 = pneg %p291
      // Predicated region
      $region37: #{tpu_custom_call.1} parent=5 // pred_check
        _
      $region38: #{tpu_custom_call.1} parent=5 // pred_check_branch
        %294 = sbr.rel (%p291) target = $region40
      $region39: #{tpu_custom_call.1} parent=5 // pred_region
        %s295 = ssub.s32 %s26, 1
        %s296 = sand.u32 %s39, 1
        %s297 = scalar_lea.sflag [#allocation3], %s296
        %s298 = sand.u32 %s39, 1
        %s299 = smul.addr %s298, 48
        %s300 = scalar_lea.vmem [#allocation2], %s299
        // Predicated region
        $region41: #{tpu_custom_call.1} parent=39 // pred_check
          %p301 = pneg %p52
        $region42: #{tpu_custom_call.1} parent=39 // pred_check_branch
          %303 = sbr.rel (%p301) target = $region44
        $region43: #{tpu_custom_call.1} parent=39 // pred_region
          %305 = dma.done %s297, 768
        $region44: #{tpu_custom_call.1} parent=39 // pred_fallthru
          _
        %s306 = sand.u32 %s31, 1
        %s307 = scalar_lea.sflag [#allocation6], %s306
        %s308 = sand.u32 %s65, 1
        %s309 = smul.addr %s308, 80
        %s310 = scalar_lea.vmem [#allocation5], %s309
        // Predicated region
        $region45: #{tpu_custom_call.1} parent=39 // pred_check
          %p311 = pneg %p78
        $region46: #{tpu_custom_call.1} parent=39 // pred_check_branch
          %313 = sbr.rel (%p311) target = $region48
        $region47: #{tpu_custom_call.1} parent=39 // pred_region
          %315 = dma.done %s307, 1280
        $region48: #{tpu_custom_call.1} parent=39 // pred_fallthru
          _
        // Predicated region
        $region49: #{tpu_custom_call.1} parent=39 // pred_check
          %p316 = pneg %p99
        $region50: #{tpu_custom_call.1} parent=39 // pred_check_branch
          %318 = sbr.rel (%p316) target = $region52
        $region51: #{tpu_custom_call.1} parent=39 // pred_region
          %320 = dma.done [#allocation6], 6144
        $region52: #{tpu_custom_call.1} parent=39 // pred_fallthru
          _
        // Predicated region
        $region53: #{tpu_custom_call.1} parent=39 // pred_check
          %p321 = pneg %p120
        $region54: #{tpu_custom_call.1} parent=39 // pred_check_branch
          %323 = sbr.rel (%p321) target = $region56
        $region55: #{tpu_custom_call.1} parent=39 // pred_region
          %325 = dma.done [#allocation9], 10240
        $region56: #{tpu_custom_call.1} parent=39 // pred_fallthru
          _
        %s326 = sand.u32 %s39, 1
        %s327 = scalar_lea.sflag [#allocation3], %s326
        %s328 = sand.u32 %s39, 1
        %s329 = smul.addr %s328, 48
        %s330 = scalar_lea.vmem [#allocation2], %s329
        %p331 = pneg %p52
        %p332 = pneg %p49
        %s333 = sand.u32 %s31, 1
        %s334 = scalar_lea.sflag [#allocation6], %s333
        %s335 = sand.u32 %s65, 1
        %s336 = smul.addr %s335, 80
        %s337 = scalar_lea.vmem [#allocation5], %s336
        %p338 = pneg %p78
        %p339 = pneg %p75
        %p340 = pneg %p99
        %p341 = pneg %p96
        %p342 = pneg %p120
        %p343 = pneg %p117
        %p344 = pneg %p141
        %p345 = pneg %p138
        %p346 = pneg %p167
        %p347 = pneg %p164
        %s348 = sand.u32 %s154, 1
        %s349 = scalar_lea.sflag [#allocation4], %s348
        %s350 = sand.u32 %s154, 1
        %s351 = smul.addr %s350, 16
        %s352 = scalar_lea.vmem [#allocation10], %s351
        %p353 = pneg %p193
        %p354 = pneg %p190
        %s355 = sand.u32 %s180, 1
        %s356 = scalar_lea.sflag [#allocation12], %s355
        %s357 = sand.u32 %s180, 1
        %s358 = smul.addr %s357, 8
        %s359 = scalar_lea.vmem [#allocation11], %s358
        %s360 = smul.u32 2, %s31
        %s361 = smul.u32 2, %s31
        %s362 = smul.u32 2, %s31
        %v363 = vld [vmem:[%s300] sm:$0xff]
        %v364 = vld [vmem:[%s300 + $0x8] sm:$0xff]
        %v365 = vld [vmem:[%s300 + $0x10] sm:$0xff]
        %v366 = vld [vmem:[%s300 + $0x18] sm:$0xff]
        %v367 = vld [vmem:[%s300 + $0x20] sm:$0xff]
        %v368 = vld [vmem:[%s300 + $0x28] sm:$0xff]
        %v369 = vld [vmem:[#allocation7] sm:$0xff]
        %v370 = vld [vmem:[#allocation7 + $0x8] sm:$0xff]
        %v371 = vld [vmem:[#allocation7 + $0x10] sm:$0xff]
        %v372 = vld [vmem:[#allocation7 + $0x18] sm:$0xff]
        %v373 = vld [vmem:[#allocation7 + $0x20] sm:$0xff]
        %v374 = vld [vmem:[#allocation7 + $0x28] sm:$0xff]
        %v375 = vld [vmem:[#allocation7 + $0x30] sm:$0xff]
        %v376 = vld [vmem:[#allocation7 + $0x38] sm:$0xff]
        %v377 = vld [vmem:[#allocation7 + $0x40] sm:$0xff]
        %v378 = vld [vmem:[#allocation7 + $0x48] sm:$0xff]
        %v379 = vld [vmem:[#allocation7 + $0x50] sm:$0xff]
        %v380 = vld [vmem:[#allocation7 + $0x58] sm:$0xff]
        %v381 = vld [vmem:[#allocation7 + $0x60] sm:$0xff]
        %v382 = vld [vmem:[#allocation7 + $0x68] sm:$0xff]
        %v383 = vld [vmem:[#allocation7 + $0x70] sm:$0xff]
        %v384 = vld [vmem:[#allocation7 + $0x78] sm:$0xff]
        %v385 = vld [vmem:[#allocation7 + $0x80] sm:$0xff]
        %v386 = vld [vmem:[#allocation7 + $0x88] sm:$0xff]
        %v387 = vld [vmem:[#allocation7 + $0x90] sm:$0xff]
        %v388 = vld [vmem:[#allocation7 + $0x98] sm:$0xff]
        %v389 = vld [vmem:[#allocation7 + $0xa0] sm:$0xff]
        %v390 = vld [vmem:[#allocation7 + $0xa8] sm:$0xff]
        %v391 = vld [vmem:[#allocation7 + $0xb0] sm:$0xff]
        %v392 = vld [vmem:[#allocation7 + $0xb8] sm:$0xff]
        %v393 = vld [vmem:[#allocation7 + $0xc0] sm:$0xff]
        %v394 = vld [vmem:[#allocation7 + $0xc8] sm:$0xff]
        %v395 = vld [vmem:[#allocation7 + $0xd0] sm:$0xff]
        %v396 = vld [vmem:[#allocation7 + $0xd8] sm:$0xff]
        %v397 = vld [vmem:[#allocation7 + $0xe0] sm:$0xff]
        %v398 = vld [vmem:[#allocation7 + $0xe8] sm:$0xff]
        %v399 = vld [vmem:[#allocation7 + $0xf0] sm:$0xff]
        %v400 = vld [vmem:[#allocation7 + $0xf8] sm:$0xff]
        %v401 = vld [vmem:[#allocation7 + $0x100] sm:$0xff]
        %v402 = vld [vmem:[#allocation7 + $0x108] sm:$0xff]
        %v403 = vld [vmem:[#allocation7 + $0x110] sm:$0xff]
        %v404 = vld [vmem:[#allocation7 + $0x118] sm:$0xff]
        %v405 = vld [vmem:[#allocation7 + $0x120] sm:$0xff]
        %v406 = vld [vmem:[#allocation7 + $0x128] sm:$0xff]
        %v407 = vld [vmem:[#allocation7 + $0x130] sm:$0xff]
        %v408 = vld [vmem:[#allocation7 + $0x138] sm:$0xff]
        %v409 = vld [vmem:[#allocation7 + $0x140] sm:$0xff]
        %v410 = vld [vmem:[#allocation7 + $0x148] sm:$0xff]
        %v411 = vld [vmem:[#allocation7 + $0x150] sm:$0xff]
        %v412 = vld [vmem:[#allocation7 + $0x158] sm:$0xff]
        %v413 = vld [vmem:[#allocation7 + $0x160] sm:$0xff]
        %v414 = vld [vmem:[#allocation7 + $0x168] sm:$0xff]
        %v415 = vld [vmem:[#allocation7 + $0x170] sm:$0xff]
        %v416 = vld [vmem:[#allocation7 + $0x178] sm:$0xff]
        %v417 = vld [vmem:[%s310] sm:$0xff]
        %v418 = vld [vmem:[%s310 + $0x8] sm:$0xff]
        %v419 = vld [vmem:[%s310 + $0x10] sm:$0xff]
        %v420 = vld [vmem:[%s310 + $0x18] sm:$0xff]
        %v421 = vld [vmem:[%s310 + $0x20] sm:$0xff]
        %v422 = vld [vmem:[%s310 + $0x28] sm:$0xff]
        %v423 = vld [vmem:[%s310 + $0x30] sm:$0xff]
        %v424 = vld [vmem:[%s310 + $0x38] sm:$0xff]
        %v425 = vld [vmem:[%s310 + $0x40] sm:$0xff]
        %v426 = vld [vmem:[%s310 + $0x48] sm:$0xff]
        %v427 = vld [vmem:[#allocation8] sm:$0xff]
        %v428 = vld [vmem:[#allocation8 + $0x8] sm:$0xff]
        %v429 = vld [vmem:[#allocation8 + $0x10] sm:$0xff]
        %v430 = vld [vmem:[#allocation8 + $0x18] sm:$0xff]
        %v431 = vld [vmem:[#allocation8 + $0x20] sm:$0xff]
        %v432 = vld [vmem:[#allocation8 + $0x28] sm:$0xff]
        %v433 = vld [vmem:[#allocation8 + $0x30] sm:$0xff]
        %v434 = vld [vmem:[#allocation8 + $0x38] sm:$0xff]
        %v435 = vld [vmem:[#allocation8 + $0x40] sm:$0xff]
        %v436 = vld [vmem:[#allocation8 + $0x48] sm:$0xff]
        %v437 = vld [vmem:[#allocation8 + $0x50] sm:$0xff]
        %v438 = vld [vmem:[#allocation8 + $0x58] sm:$0xff]
        %v439 = vld [vmem:[#allocation8 + $0x60] sm:$0xff]
        %v440 = vld [vmem:[#allocation8 + $0x68] sm:$0xff]
        %v441 = vld [vmem:[#allocation8 + $0x70] sm:$0xff]
        %v442 = vld [vmem:[#allocation8 + $0x78] sm:$0xff]
        %v443 = vld [vmem:[#allocation8 + $0x80] sm:$0xff]
        %v444 = vld [vmem:[#allocation8 + $0x88] sm:$0xff]
        %v445 = vld [vmem:[#allocation8 + $0x90] sm:$0xff]
        %v446 = vld [vmem:[#allocation8 + $0x98] sm:$0xff]
        %v447 = vld [vmem:[#allocation8 + $0xa0] sm:$0xff]
        %v448 = vld [vmem:[#allocation8 + $0xa8] sm:$0xff]
        %v449 = vld [vmem:[#allocation8 + $0xb0] sm:$0xff]
        %v450 = vld [vmem:[#allocation8 + $0xb8] sm:$0xff]
        %v451 = vld [vmem:[#allocation8 + $0xc0] sm:$0xff]
        %v452 = vld [vmem:[#allocation8 + $0xc8] sm:$0xff]
        %v453 = vld [vmem:[#allocation8 + $0xd0] sm:$0xff]
        %v454 = vld [vmem:[#allocation8 + $0xd8] sm:$0xff]
        %v455 = vld [vmem:[#allocation8 + $0xe0] sm:$0xff]
        %v456 = vld [vmem:[#allocation8 + $0xe8] sm:$0xff]
        %v457 = vld [vmem:[#allocation8 + $0xf0] sm:$0xff]
        %v458 = vld [vmem:[#allocation8 + $0xf8] sm:$0xff]
        %v459 = vld [vmem:[#allocation8 + $0x100] sm:$0xff]
        %v460 = vld [vmem:[#allocation8 + $0x108] sm:$0xff]
        %v461 = vld [vmem:[#allocation8 + $0x110] sm:$0xff]
        %v462 = vld [vmem:[#allocation8 + $0x118] sm:$0xff]
        %v463 = vld [vmem:[#allocation8 + $0x120] sm:$0xff]
        %v464 = vld [vmem:[#allocation8 + $0x128] sm:$0xff]
        %v465 = vld [vmem:[#allocation8 + $0x130] sm:$0xff]
        %v466 = vld [vmem:[#allocation8 + $0x138] sm:$0xff]
        %v467 = vld [vmem:[#allocation8 + $0x140] sm:$0xff]
        %v468 = vld [vmem:[#allocation8 + $0x148] sm:$0xff]
        %v469 = vld [vmem:[#allocation8 + $0x150] sm:$0xff]
        %v470 = vld [vmem:[#allocation8 + $0x158] sm:$0xff]
        %v471 = vld [vmem:[#allocation8 + $0x160] sm:$0xff]
        %v472 = vld [vmem:[#allocation8 + $0x168] sm:$0xff]
        %v473 = vld [vmem:[#allocation8 + $0x170] sm:$0xff]
        %v474 = vld [vmem:[#allocation8 + $0x178] sm:$0xff]
        %v475 = vld [vmem:[#allocation8 + $0x180] sm:$0xff]
        %v476 = vld [vmem:[#allocation8 + $0x188] sm:$0xff]
        %v477 = vld [vmem:[#allocation8 + $0x190] sm:$0xff]
        %v478 = vld [vmem:[#allocation8 + $0x198] sm:$0xff]
        %v479 = vld [vmem:[#allocation8 + $0x1a0] sm:$0xff]
        %v480 = vld [vmem:[#allocation8 + $0x1a8] sm:$0xff]
        %v481 = vld [vmem:[#allocation8 + $0x1b0] sm:$0xff]
        %v482 = vld [vmem:[#allocation8 + $0x1b8] sm:$0xff]
        %v483 = vld [vmem:[#allocation8 + $0x1c0] sm:$0xff]
        %v484 = vld [vmem:[#allocation8 + $0x1c8] sm:$0xff]
        %v485 = vld [vmem:[#allocation8 + $0x1d0] sm:$0xff]
        %v486 = vld [vmem:[#allocation8 + $0x1d8] sm:$0xff]
        %v487 = vld [vmem:[#allocation8 + $0x1e0] sm:$0xff]
        %v488 = vld [vmem:[#allocation8 + $0x1e8] sm:$0xff]
        %v489 = vld [vmem:[#allocation8 + $0x1f0] sm:$0xff]
        %v490 = vld [vmem:[#allocation8 + $0x1f8] sm:$0xff]
        %v491 = vld [vmem:[#allocation8 + $0x200] sm:$0xff]
        %v492 = vld [vmem:[#allocation8 + $0x208] sm:$0xff]
        %v493 = vld [vmem:[#allocation8 + $0x210] sm:$0xff]
        %v494 = vld [vmem:[#allocation8 + $0x218] sm:$0xff]
        %v495 = vld [vmem:[#allocation8 + $0x220] sm:$0xff]
        %v496 = vld [vmem:[#allocation8 + $0x228] sm:$0xff]
        %v497 = vld [vmem:[#allocation8 + $0x230] sm:$0xff]
        %v498 = vld [vmem:[#allocation8 + $0x238] sm:$0xff]
        %v499 = vld [vmem:[#allocation8 + $0x240] sm:$0xff]
        %v500 = vld [vmem:[#allocation8 + $0x248] sm:$0xff]
        %v501 = vld [vmem:[#allocation8 + $0x250] sm:$0xff]
        %v502 = vld [vmem:[#allocation8 + $0x258] sm:$0xff]
        %v503 = vld [vmem:[#allocation8 + $0x260] sm:$0xff]
        %v504 = vld [vmem:[#allocation8 + $0x268] sm:$0xff]
        %v505 = vld [vmem:[#allocation8 + $0x270] sm:$0xff]
        %v506 = vld [vmem:[#allocation8 + $0x278] sm:$0xff]
        %507 = vmatpush.msra.mxu0 %v442
        %508 = vmatpush.msra.mxu0 %v441
        %509 = vmatpush.msra.mxu0 %v440
        %510 = vmatpush.msra.mxu0 %v439
        %511 = vmatpush.msra.mxu0 %v438
        %512 = vmatpush.msra.mxu0 %v437
        %513 = vmatpush.msra.mxu0 %v436
        %514 = vmatpush.msra.mxu0 %v435
        %515 = vmatpush.msra.mxu0 %v434
        %516 = vmatpush.msra.mxu0 %v433
        %517 = vmatpush.msra.mxu0 %v432
        %518 = vmatpush.msra.mxu0 %v431
        %519 = vmatpush.msra.mxu0 %v430
        %520 = vmatpush.msra.mxu0 %v429
        %521 = vmatpush.msra.mxu0 %v428
        %522 = vmatpush.msra.mxu0 %v427
        %523 = vmatmul.f32.gmra.mxu0 %v417
        %v524 = vpop.f32.mrf.mxu0
        %v525 = vadd.f32 0.0, %v524
        %526 = vmatmul.f32.gmra.mxu0 %v422
        %v527 = vpop.f32.mrf.mxu0
        %v528 = vadd.f32 0.0, %v527
        %529 = vdwg.mxu0
        %530 = vmatpush.msra.mxu0 %v458
        %531 = vmatpush.msra.mxu0 %v457
        %532 = vmatpush.msra.mxu0 %v456
        %533 = vmatpush.msra.mxu0 %v455
        %534 = vmatpush.msra.mxu0 %v454
        %535 = vmatpush.msra.mxu0 %v453
        %536 = vmatpush.msra.mxu0 %v452
        %537 = vmatpush.msra.mxu0 %v451
        %538 = vmatpush.msra.mxu0 %v450
        %539 = vmatpush.msra.mxu0 %v449
        %540 = vmatpush.msra.mxu0 %v448
        %541 = vmatpush.msra.mxu0 %v447
        %542 = vmatpush.msra.mxu0 %v446
        %543 = vmatpush.msra.mxu0 %v445
        %544 = vmatpush.msra.mxu0 %v444
        %545 = vmatpush.msra.mxu0 %v443
        %546 = vmatmul.f32.gmra.mxu0 %v418
        %v547 = vpop.f32.mrf.mxu0
        %v548 = vadd.f32 %v525, %v547
        %549 = vmatmul.f32.gmra.mxu0 %v423
        %v550 = vpop.f32.mrf.mxu0
        %v551 = vadd.f32 %v528, %v550
        %552 = vdwg.mxu0
        %553 = vmatpush.msra.mxu0 %v474
        %554 = vmatpush.msra.mxu0 %v473
        %555 = vmatpush.msra.mxu0 %v472
        %556 = vmatpush.msra.mxu0 %v471
        %557 = vmatpush.msra.mxu0 %v470
        %558 = vmatpush.msra.mxu0 %v469
        %559 = vmatpush.msra.mxu0 %v468
        %560 = vmatpush.msra.mxu0 %v467
        %561 = vmatpush.msra.mxu0 %v466
        %562 = vmatpush.msra.mxu0 %v465
        %563 = vmatpush.msra.mxu0 %v464
        %564 = vmatpush.msra.mxu0 %v463
        %565 = vmatpush.msra.mxu0 %v462
        %566 = vmatpush.msra.mxu0 %v461
        %567 = vmatpush.msra.mxu0 %v460
        %568 = vmatpush.msra.mxu0 %v459
        %569 = vmatmul.f32.gmra.mxu0 %v419
        %v570 = vpop.f32.mrf.mxu0
        %v571 = vadd.f32 %v548, %v570
        %572 = vmatmul.f32.gmra.mxu0 %v424
        %v573 = vpop.f32.mrf.mxu0
        %v574 = vadd.f32 %v551, %v573
        %575 = vdwg.mxu0
        %576 = vmatpush.msra.mxu0 %v490
        %577 = vmatpush.msra.mxu0 %v489
        %578 = vmatpush.msra.mxu0 %v488
        %579 = vmatpush.msra.mxu0 %v487
        %580 = vmatpush.msra.mxu0 %v486
        %581 = vmatpush.msra.mxu0 %v485
        %582 = vmatpush.msra.mxu0 %v484
        %583 = vmatpush.msra.mxu0 %v483
        %584 = vmatpush.msra.mxu0 %v482
        %585 = vmatpush.msra.mxu0 %v481
        %586 = vmatpush.msra.mxu0 %v480
        %587 = vmatpush.msra.mxu0 %v479
        %588 = vmatpush.msra.mxu0 %v478
        %589 = vmatpush.msra.mxu0 %v477
        %590 = vmatpush.msra.mxu0 %v476
        %591 = vmatpush.msra.mxu0 %v475
        %592 = vmatmul.f32.gmra.mxu0 %v420
        %v593 = vpop.f32.mrf.mxu0
        %v594 = vadd.f32 %v571, %v593
        %595 = vmatmul.f32.gmra.mxu0 %v425
        %v596 = vpop.f32.mrf.mxu0
        %v597 = vadd.f32 %v574, %v596
        %598 = vdwg.mxu0
        %599 = vmatpush.msra.mxu0 %v506
        %600 = vmatpush.msra.mxu0 %v505
        %601 = vmatpush.msra.mxu0 %v504
        %602 = vmatpush.msra.mxu0 %v503
        %603 = vmatpush.msra.mxu0 %v502
        %604 = vmatpush.msra.mxu0 %v501
        %605 = vmatpush.msra.mxu0 %v500
        %606 = vmatpush.msra.mxu0 %v499
        %607 = vmatpush.msra.mxu0 %v498
        %608 = vmatpush.msra.mxu0 %v497
        %609 = vmatpush.msra.mxu0 %v496
        %610 = vmatpush.msra.mxu0 %v495
        %611 = vmatpush.msra.mxu0 %v494
        %612 = vmatpush.msra.mxu0 %v493
        %613 = vmatpush.msra.mxu0 %v492
        %614 = vmatpush.msra.mxu0 %v491
        %615 = vmatmul.f32.gmra.mxu0 %v421
        %v616 = vpop.f32.mrf.mxu0
        %v617 = vadd.f32 %v594, %v616
        %618 = vmatmul.f32.gmra.mxu0 %v426
        %v619 = vpop.f32.mrf.mxu0
        %v620 = vadd.f32 %v597, %v619
        %621 = vdwg.mxu0
        %622 = vmatpush.msra.mxu0 %v384
        %623 = vmatpush.msra.mxu0 %v383
        %624 = vmatpush.msra.mxu0 %v382
        %625 = vmatpush.msra.mxu0 %v381
        %626 = vmatpush.msra.mxu0 %v380
        %627 = vmatpush.msra.mxu0 %v379
        %628 = vmatpush.msra.mxu0 %v378
        %629 = vmatpush.msra.mxu0 %v377
        %630 = vmatpush.msra.mxu0 %v376
        %631 = vmatpush.msra.mxu0 %v375
        %632 = vmatpush.msra.mxu0 %v374
        %633 = vmatpush.msra.mxu0 %v373
        %634 = vmatpush.msra.mxu0 %v372
        %635 = vmatpush.msra.mxu0 %v371
        %636 = vmatpush.msra.mxu0 %v370
        %637 = vmatpush.msra.mxu0 %v369
        %638 = vmatmul.f32.gmra.mxu0 %v363
        %v639 = vpop.f32.mrf.mxu0
        %v640 = vadd.f32 %v617, %v639
        %641 = vmatmul.f32.gmra.mxu0 %v366
        %v642 = vpop.f32.mrf.mxu0
        %v643 = vadd.f32 %v620, %v642
        %644 = vdwg.mxu0
        %645 = vmatpush.msra.mxu0 %v400
        %646 = vmatpush.msra.mxu0 %v399
        %647 = vmatpush.msra.mxu0 %v398
        %648 = vmatpush.msra.mxu0 %v397
        %649 = vmatpush.msra.mxu0 %v396
        %650 = vmatpush.msra.mxu0 %v395
        %651 = vmatpush.msra.mxu0 %v394
        %652 = vmatpush.msra.mxu0 %v393
        %653 = vmatpush.msra.mxu0 %v392
        %654 = vmatpush.msra.mxu0 %v391
        %655 = vmatpush.msra.mxu0 %v390
        %656 = vmatpush.msra.mxu0 %v389
        %657 = vmatpush.msra.mxu0 %v388
        %658 = vmatpush.msra.mxu0 %v387
        %659 = vmatpush.msra.mxu0 %v386
        %660 = vmatpush.msra.mxu0 %v385
        %661 = vmatmul.f32.gmra.mxu0 %v364
        %v662 = vpop.f32.mrf.mxu0
        %v663 = vadd.f32 %v640, %v662
        %664 = vmatmul.f32.gmra.mxu0 %v367
        %v665 = vpop.f32.mrf.mxu0
        %v666 = vadd.f32 %v643, %v665
        %667 = vdwg.mxu0
        %668 = vmatpush.msra.mxu0 %v416
        %669 = vmatpush.msra.mxu0 %v415
        %670 = vmatpush.msra.mxu0 %v414
        %671 = vmatpush.msra.mxu0 %v413
        %672 = vmatpush.msra.mxu0 %v412
        %673 = vmatpush.msra.mxu0 %v411
        %674 = vmatpush.msra.mxu0 %v410
        %675 = vmatpush.msra.mxu0 %v409
        %676 = vmatpush.msra.mxu0 %v408
        %677 = vmatpush.msra.mxu0 %v407
        %678 = vmatpush.msra.mxu0 %v406
        %679 = vmatpush.msra.mxu0 %v405
        %680 = vmatpush.msra.mxu0 %v404
        %681 = vmatpush.msra.mxu0 %v403
        %682 = vmatpush.msra.mxu0 %v402
        %683 = vmatpush.msra.mxu0 %v401
        %684 = vmatmul.f32.gmra.mxu0 %v365
        %v685 = vpop.f32.mrf.mxu0
        %v686 = vadd.f32 %v663, %v685
        %687 = vmatmul.f32.gmra.mxu0 %v368
        %v688 = vpop.f32.mrf.mxu0
        %v689 = vadd.f32 %v666, %v688
        %690 = vdwg.mxu0
        %v691 = vld [vmem:[%s4] sm:$0x1]
        %v693 = vperm.slane %v691, 0
        %v695 = vadd.f32 %v686, %v693
        %v696 = vadd.f32 %v689, %v693
        %697 = vst [vmem:[%s352] sm:$0xff] %v695
        %698 = vst [vmem:[%s352 + $0x8] sm:$0xff] %v696
        %699 = vst [vmem:[%s359 + $0x2] sm:$0x3f] 0.0
        %p700 = scmp.ne.s32.totalorder %s31, 1
        // Predicated region
        $region57: #{tpu_custom_call.1} parent=39 // pred_check
          %p701 = pneg %p700
        $region58: #{tpu_custom_call.1} parent=39 // pred_check_branch
          %703 = sbr.rel (%p701) target = $region60
        $region59: #{tpu_custom_call.1} parent=39 // pred_region
          %v704 = vadd.f32 %v686, %v689
          %v705 = vrot.slane %v704, 4
          %v706 = vadd.f32 %v704, %v705
          %v707 = vrot.slane %v706, 2
          %v708 = vadd.f32 %v706, %v707
          %v709 = vrot.slane %v708, 1
          %v710 = vadd.f32 %v708, %v709
          %711 = vst [vmem:[%s359] sm:$0x1] %v710
          %v712 = vmul.f32 %v686, %v686
          %v713 = vmul.f32 %v689, %v689
          %v714 = vadd.f32 %v712, %v713
          %v715 = vrot.slane %v714, 4
          %v716 = vadd.f32 %v714, %v715
          %v717 = vrot.slane %v716, 2
          %v718 = vadd.f32 %v716, %v717
          %v719 = vrot.slane %v718, 1
          %v720 = vadd.f32 %v718, %v719
          %721 = vst [vmem:[%s359 + $0x1] sm:$0x1] %v720
        $region60: #{tpu_custom_call.1} parent=39 // pred_fallthru
          _
        %p722 = scmp.eq.s32.totalorder %s31, 1
        // Predicated region
        $region61: #{tpu_custom_call.1} parent=39 // pred_check
          %p723 = pneg %p722
        $region62: #{tpu_custom_call.1} parent=39 // pred_check_branch
          %725 = sbr.rel (%p723) target = $region64
        $region63: #{tpu_custom_call.1} parent=39 // pred_region
          %v726 = vlaneseq
          %v727 = vshrl.u32 %v726, 7
          %v728 = vadd.s32 %v727, 8
          %vm729 = vcmp.lt.s32.totalorder %v727, 4
          %vm730 = vcmp.lt.s32.totalorder %v728, 4
          %v731 = vsel %vm729, 1, 0
          %v732 = vsel %vm730, 1, 0
          %v733 = vcvt.s32.f32 %v731
          %v734 = vcvt.s32.f32 %v732
          %v735 = vmul.f32 %v686, %v733
          %v736 = vmul.f32 %v689, %v734
          %v737 = vadd.f32 %v735, %v736
          %v738 = vrot.slane %v737, 4
          %v739 = vadd.f32 %v737, %v738
          %v740 = vrot.slane %v739, 2
          %v741 = vadd.f32 %v739, %v740
          %v742 = vrot.slane %v741, 1
          %v743 = vadd.f32 %v741, %v742
          %744 = vst [vmem:[%s359] sm:$0x1] %v743
          %v745 = vmul.f32 %v735, %v686
          %v746 = vmul.f32 %v736, %v689
          %v747 = vadd.f32 %v745, %v746
          %v748 = vrot.slane %v747, 4
          %v749 = vadd.f32 %v747, %v748
          %v750 = vrot.slane %v749, 2
          %v751 = vadd.f32 %v749, %v750
          %v752 = vrot.slane %v751, 1
          %v753 = vadd.f32 %v751, %v752
          %754 = vst [vmem:[%s359 + $0x1] sm:$0x1] %v753
        $region64: #{tpu_custom_call.1} parent=39 // pred_fallthru
          _
        %s755 = sand.u32 %s154, 1
        %s756 = scalar_lea.sflag [#allocation4], %s755
        %s757 = sand.u32 %s154, 1
        %s758 = smul.addr %s757, 16
        %s759 = scalar_lea.vmem [#allocation10], %s758
        %s760 = sand.u32 %s180, 1
        %s761 = scalar_lea.sflag [#allocation12], %s760
        %s762 = sand.u32 %s180, 1
        %s763 = smul.addr %s762, 8
        %s764 = scalar_lea.vmem [#allocation11], %s763
        // Predicated region
        $region65: #{tpu_custom_call.1} parent=39 // pred_check
          %p765 = pneg %p164
        $region66: #{tpu_custom_call.1} parent=39 // pred_check_branch
          %767 = sbr.rel (%p765) target = $region68
        $region67: #{tpu_custom_call.1} parent=39 // pred_region
          %s768 = smul.u32 2, %s31
          %770 = vsyncadd %s756, 0
          %s771 = smul.addr %s768, 8
          %s772 = scalar_lea.hbm %s5, %s771
          %s773 = sshll.u32 %s759, 4
          %s774 = int_to_ptr.vmem [resolvable:$true] %s773
          %s775 = sshll.u32 %s772, 4
          %s776 = int_to_ptr.hbm [resolvable:$true] %s775
          %781 = dma.vmem_to_hbm [thread:$0]  %s774, 256, %s776, %s756, 128, 128, 8
        $region68: #{tpu_custom_call.1} parent=39 // pred_fallthru
          _
        // Predicated region
        $region69: #{tpu_custom_call.1} parent=39 // pred_check
          %p782 = pneg %p190
        $region70: #{tpu_custom_call.1} parent=39 // pred_check_branch
          %784 = sbr.rel (%p782) target = $region72
        $region71: #{tpu_custom_call.1} parent=39 // pred_region
          %786 = vsyncadd %s761, 0
          %s787 = smul.addr %s31, 8
          %s788 = scalar_lea.hbm %s6, %s787
          %s790 = sshll.u32 %s764, 4
          %s791 = int_to_ptr.vmem [resolvable:$true] %s790
          %s792 = sshll.u32 %s788, 4
          %s793 = int_to_ptr.hbm [resolvable:$true] %s792
          %795 = dma.vmem_to_hbm [thread:$0]  %s791, 128, %s793, %s761
        $region72: #{tpu_custom_call.1} parent=39 // pred_fallthru
          _
      $region40: #{tpu_custom_call.1} parent=5 // pred_fallthru
        _
      %p796 = scmp.le.s32.totalorder 2, %s26
      // Predicated region
      $region73: #{tpu_custom_call.1} parent=5 // pred_check
        %p797 = pneg %p796
      $region74: #{tpu_custom_call.1} parent=5 // pred_check_branch
        %799 = sbr.rel (%p797) target = $region76
      $region75: #{tpu_custom_call.1} parent=5 // pred_region
        %s800 = ssub.s32 %s26, 2
        // Predicated region
        $region77: #{tpu_custom_call.1} parent=75 // pred_check
          %p801 = pneg %p170
        $region78: #{tpu_custom_call.1} parent=75 // pred_check_branch
          %803 = sbr.rel (%p801) target = $region80
        $region79: #{tpu_custom_call.1} parent=75 // pred_region
          %s804 = sand.u32 %s155, 1
          %s805 = scalar_lea.sflag [#allocation4], %s804
          %s806 = sand.u32 %s155, 1
          %s807 = smul.addr %s806, 16
          %s808 = scalar_lea.vmem [#allocation10], %s807
          %810 = dma.done %s805, 256
        $region80: #{tpu_custom_call.1} parent=75 // pred_fallthru
          _
        // Predicated region
        $region81: #{tpu_custom_call.1} parent=75 // pred_check
          %p811 = pneg %p196
        $region82: #{tpu_custom_call.1} parent=75 // pred_check_branch
          %813 = sbr.rel (%p811) target = $region84
        $region83: #{tpu_custom_call.1} parent=75 // pred_region
          %s814 = sand.u32 %s181, 1
          %s815 = scalar_lea.sflag [#allocation12], %s814
          %s816 = sand.u32 %s181, 1
          %s817 = smul.addr %s816, 8
          %s818 = scalar_lea.vmem [#allocation11], %s817
          %820 = dma.done %s815, 128
        $region84: #{tpu_custom_call.1} parent=75 // pred_fallthru
          _
      $region76: #{tpu_custom_call.1} parent=5 // pred_fallthru
        _
    $region6: #{tpu_custom_call.1} parent=1 // loop_footer
      %s30 = sadd.s32 1, %s26
    $region7: #{tpu_custom_call.1} parent=1 // loop_footer_branch
      %25 = sbr.rel target = $region3
    $region8: #{tpu_custom_call.1} parent=1 // loop_exit
      _
    %821 = vsyncpa [#allocation3], 1
    %s822 = scalar_lea.sflag [#allocation3], 1
    %823 = vsyncpa %s822, 1
    %824 = vsyncpa [#allocation6], 1
    %s825 = scalar_lea.sflag [#allocation6], 1
    %826 = vsyncpa %s825, 1
    %827 = vsyncpa [#allocation9], 1
    %828 = vsyncpa [#allocation4], 1
    %s829 = scalar_lea.sflag [#allocation4], 1
    %830 = vsyncpa %s829, 1
    %831 = vsyncpa [#allocation12], 1
    %s832 = scalar_lea.sflag [#allocation12], 1
    %833 = vsyncpa %s832, 1

</llo_original>
